<compile_context>
chip_gen: v7x
topology: tpu7x:2x2x1
jax: 0.10.0
libtpu: 0.0.40
codegen_flags: <defaults>
</compile_context>

<pallas_src>
import jax
import jax.numpy as jnp
from jax import lax
from jax.experimental import pallas as pl
from jax.experimental.pallas import tpu as pltpu

# ---------------- configuration (small, consistent with the module) -------
B = 2            # batch
S = 8            # sequence length
E = 32           # embed_dim
NUM_HEADS = 4
D_K = E // NUM_HEADS
D_V = E // NUM_HEADS
HIDDEN = E       # hidden_dim defaults to embed_dim
LN_EPS = 1e-5    # torch.nn.LayerNorm default
CAUSAL = True    # mask=True default

# TODO(synk): dropout (p=0.1) is a no-op in eval mode; not implemented in-kernel.
# TODO(synk): at production sizes (E in the thousands, HIDDEN=4E, long S) this
#   all-resident-per-sequence design must be re-tiled: stream W1/W2 over a K
#   grid axis (pl.Buffered(2-3)), use >=128-row MXU passes, keep the output
#   lane dim a multiple of 128, accumulate attn into a VMEM scratch ref, and
#   set vmem_limit_bytes explicitly (v7x has only 64 MiB VMEM).


def _layernorm(x, gamma, beta):
    mu = jnp.mean(x, axis=-1, keepdims=True)
    var = jnp.mean((x - mu) * (x - mu), axis=-1, keepdims=True)
    inv = jax.lax.rsqrt(var + LN_EPS)
    return (x - mu) * inv * gamma + beta


def transformer_block_kernel(
    x_ref,        # (S, E)          f32   (leading batch dim squeezed)
    wqkv_ref,     # (H, 3, E, D_K)  bf16  (q columns pre-scaled by 1/sqrt(D_K))
    bqkv_ref,     # (H, 3, 1, D_K)  f32   (q bias pre-scaled)
    wo_ref,       # (H, D_V, E)     bf16
    w1_ref,       # (E, HIDDEN)     bf16
    w2_ref,       # (HIDDEN, E)     bf16
    vec_ref,      # (7, 1, E)       f32: ln1_g, ln1_b, ln2_g, ln2_b, bo, b1, b2
    o_ref,        # (S, E)
):
    x = x_ref[...]                                   # (S, E) f32

    ln1_g = vec_ref[0]
    ln1_b = vec_ref[1]
    ln2_g = vec_ref[2]
    ln2_b = vec_ref[3]
    bo = vec_ref[4]
    b1 = vec_ref[5]
    b2 = vec_ref[6]

    # ---------------- self-attention branch -------------------------------
    y = _layernorm(x, ln1_g, ln1_b)                  # f32
    y_bf = y.astype(jnp.bfloat16)                    # MXU operand

    s_rows = x.shape[0]
    # Per-sequence causal mask (hoisted out of the head loop).
    row = lax.broadcasted_iota(jnp.int32, (s_rows, s_rows), 0)
    col = lax.broadcasted_iota(jnp.int32, (s_rows, s_rows), 1)
    if CAUSAL:
        bias = jnp.where(col <= row, jnp.float32(0.0), jnp.float32(-1e30))
    else:
        bias = jnp.zeros((s_rows, s_rows), jnp.float32)

    # Static head loop; every head operand comes from a leading-axis-indexed
    # weight slab -> no lane slicing of live values.
    # TODO(synk): at real E, accumulate attn into a VMEM scratch ref to bound
    #   live ranges of the unrolled loop.
    attn = jnp.zeros((s_rows, E), jnp.float32)
    for h in range(NUM_HEADS):
        qh = jnp.dot(y_bf, wqkv_ref[h, 0, :, :],
                     preferred_element_type=jnp.float32) + bqkv_ref[h, 0, :, :]
        kh = jnp.dot(y_bf, wqkv_ref[h, 1, :, :],
                     preferred_element_type=jnp.float32) + bqkv_ref[h, 1, :, :]
        vh = jnp.dot(y_bf, wqkv_ref[h, 2, :, :],
                     preferred_element_type=jnp.float32) + bqkv_ref[h, 2, :, :]

        # Scores: contract on the last dim of BOTH operands (no kh.T).
        s = lax.dot_general(
            qh.astype(jnp.bfloat16), kh.astype(jnp.bfloat16),
            dimension_numbers=(((1,), (1,)), ((), ())),
            preferred_element_type=jnp.float32) + bias

        m = jnp.max(s, axis=-1, keepdims=True)
        p = jnp.exp(s - m)
        p = p * pl.reciprocal(jnp.sum(p, axis=-1, keepdims=True), approx=True)

        hv = jnp.dot(p.astype(jnp.bfloat16), vh.astype(jnp.bfloat16),
                     preferred_element_type=jnp.float32)          # (S, D_V)
        attn = attn + jnp.dot(hv.astype(jnp.bfloat16), wo_ref[h],
                              preferred_element_type=jnp.float32)  # (S, E)

    x1 = x + attn + bo                               # first residual (f32)

    # ---------------- feed-forward branch ----------------------------------
    y2 = _layernorm(x1, ln2_g, ln2_b)
    h1 = jnp.dot(y2.astype(jnp.bfloat16), w1_ref[...],
                 preferred_element_type=jnp.float32) + b1
    h1 = jnp.maximum(h1, 0.0)                        # ReLU (f32)
    ffn = jnp.dot(h1.astype(jnp.bfloat16), w2_ref[...],
                  preferred_element_type=jnp.float32) + b2

    o_ref[...] = (x1 + ffn).astype(o_ref.dtype)      # second residual


def _resident_spec(a):
    """Full-array block whose index_map is constant -> stays VMEM resident."""
    zeros = (0,) * a.ndim
    return pl.BlockSpec(a.shape, lambda b, _z=zeros: _z)


def transformer_block(x, params):
    (ln1_g, ln1_b, wq, bq, wk, bk, wv, bv, wo, bo,
     ln2_g, ln2_b, w1, b1, w2, b2) = params
    b_, s_, e_ = x.shape
    H, dk, dv = NUM_HEADS, D_K, D_V
    assert HIDDEN == e_, "vec-param packing assumes hidden_dim == embed_dim"

    # ---- host-side layout plumbing (wrapper work, not compute hoisting) ----
    scale = dk ** -0.5
    wq_s = (wq * scale).astype(jnp.float32)          # fold softmax scale into Q
    bq_s = (bq * scale).astype(jnp.float32)

    def per_head_w(w, d):                            # (E, H*d) -> (H, E, d)
        return jnp.transpose(w.reshape(e_, H, d), (1, 0, 2))

    def per_head_b(b, d):                            # (1, H*d) -> (H, 1, d)
        return b.reshape(H, 1, d)

    wqkv_h = jnp.stack(
        [per_head_w(wq_s, dk), per_head_w(wk, dk), per_head_w(wv, dv)],
        axis=1).astype(jnp.bfloat16)                 # (H, 3, E, D_K)
    bqkv_h = jnp.stack(
        [per_head_b(bq_s, dk), per_head_b(bk, dk), per_head_b(bv, dv)],
        axis=1).astype(jnp.float32)                  # (H, 3, 1, D_K)
    wo_h = wo.reshape(H, dv, e_).astype(jnp.bfloat16)
    w1_bf = w1.astype(jnp.bfloat16)
    w2_bf = w2.astype(jnp.bfloat16)
    vec = jnp.stack([ln1_g, ln1_b, ln2_g, ln2_b, bo, b1, b2],
                    axis=0).astype(jnp.float32)      # (7, 1, E)

    in_specs = [
        pl.BlockSpec((None, s_, e_), lambda b: (b, 0, 0)),   # x: one sequence
        _resident_spec(wqkv_h),
        _resident_spec(bqkv_h),
        _resident_spec(wo_h),
        _resident_spec(w1_bf),
        _resident_spec(w2_bf),
        _resident_spec(vec),
    ]
    out_spec = pl.BlockSpec((None, s_, e_), lambda b: (b, 0, 0))

    out = pl.pallas_call(
        transformer_block_kernel,
        out_shape=jax.ShapeDtypeStruct((b_, s_, e_), x.dtype),
        grid=(b_,),
        in_specs=in_specs,
        out_specs=out_spec,
        compiler_params=pltpu.CompilerParams(
            dimension_semantics=("parallel",)),
    )(x, wqkv_h, bqkv_h, wo_h, w1_bf, w2_bf, vec)
    return out


def _init_params(key):
    ks = jax.random.split(key, 6)
    std = 0.02
    ln1_g = jnp.ones((1, E), jnp.float32)
    ln1_b = jnp.zeros((1, E), jnp.float32)
    ln2_g = jnp.ones((1, E), jnp.float32)
    ln2_b = jnp.zeros((1, E), jnp.float32)
    wq = std * jax.random.normal(ks[0], (E, NUM_HEADS * D_K), jnp.float32)
    wk = std * jax.random.normal(ks[1], (E, NUM_HEADS * D_K), jnp.float32)
    wv = std * jax.random.normal(ks[2], (E, NUM_HEADS * D_V), jnp.float32)
    wo = std * jax.random.normal(ks[3], (NUM_HEADS * D_V, E), jnp.float32)
    bq = jnp.zeros((1, NUM_HEADS * D_K), jnp.float32)
    bk = jnp.zeros((1, NUM_HEADS * D_K), jnp.float32)
    bv = jnp.zeros((1, NUM_HEADS * D_V), jnp.float32)
    bo = jnp.zeros((1, E), jnp.float32)
    w1 = std * jax.random.normal(ks[4], (E, HIDDEN), jnp.float32)
    b1 = jnp.zeros((1, HIDDEN), jnp.float32)
    w2 = std * jax.random.normal(ks[5], (HIDDEN, E), jnp.float32)
    b2 = jnp.zeros((1, E), jnp.float32)
    return (ln1_g, ln1_b, wq, bq, wk, bk, wv, bv, wo, bo,
            ln2_g, ln2_b, w1, b1, w2, b2)


def _reference(x, params):
    (ln1_g, ln1_b, wq, bq, wk, bk, wv, bv, wo, bo,
     ln2_g, ln2_b, w1, b1, w2, b2) = params

    def ln(x, g, b):
        mu = jnp.mean(x, -1, keepdims=True)
        var = jnp.mean((x - mu) ** 2, -1, keepdims=True)
        return (x - mu) * jax.lax.rsqrt(var + LN_EPS) * g + b

    y = ln(x, ln1_g, ln1_b)
    q = y @ wq + bq
    k = y @ wk + bk
    v = y @ wv + bv
    q = q.reshape(B, S, NUM_HEADS, D_K).transpose(0, 2, 1, 3)
    k = k.reshape(B, S, NUM_HEADS, D_K).transpose(0, 2, 1, 3)
    v = v.reshape(B, S, NUM_HEADS, D_V).transpose(0, 2, 1, 3)
    scores = jnp.einsum("bhqd,bhkd->bhqk", q, k) / jnp.sqrt(jnp.float32(D_K))
    if CAUSAL:
        causal = jnp.tril(jnp.ones((S, S), bool))
        scores = jnp.where(causal, scores, -1e30)
    p = jax.nn.softmax(scores, axis=-1)
    a = jnp.einsum("bhqk,bhkd->bhqd", p, v).transpose(0, 2, 1, 3).reshape(B, S, -1)
    x1 = x + a @ wo + bo
    y2 = ln(x1, ln2_g, ln2_b)
    return x1 + jnp.maximum(y2 @ w1 + b1, 0.0) @ w2 + b2


if __name__ == "__main__":
    key = jax.random.PRNGKey(0)
    kx, kp = jax.random.split(key)
    x = jax.random.normal(kx, (B, S, E), jnp.float32)
    params = _init_params(kp)

    fn = jax.jit(transformer_block)
    out = jax.block_until_ready(fn(x, params))

    ref = _reference(x, params)
    assert out.shape == (B, S, E)
    # bf16 MXU operands + approx reciprocal -> slightly looser tolerance than
    # a pure-f32 pipeline; f32 accumulation keeps the error well below this.
    err = float(jnp.max(jnp.abs(out - ref)))
    assert err < 2e-3, f"max abs err {err}"
    print("KERNEL_OK")
</pallas_src>

<mosaic_0001>
module attributes {stable_mosaic.version = 11 : i64} {
  func.func @transformer_block_kernel(%arg0: i32, %arg1: memref<1x8x32xf32, #tpu.memory_space<vmem>>, %arg2: memref<4x3x32x8xbf16, #tpu.memory_space<vmem>>, %arg3: memref<4x3x1x8xf32, #tpu.memory_space<vmem>>, %arg4: memref<4x8x32xbf16, #tpu.memory_space<vmem>>, %arg5: memref<32x32xbf16, #tpu.memory_space<vmem>>, %arg6: memref<32x32xbf16, #tpu.memory_space<vmem>>, %arg7: memref<7x1x32xf32, #tpu.memory_space<vmem>>, %arg8: memref<1x8x32xf32, #tpu.memory_space<vmem>>) attributes {dimension_semantics = [#tpu.dimension_semantics<parallel>], iteration_bounds = array<i64: 2>, scalar_prefetch = 0 : i64, scratch_operands = 0 : i64, tpu.core_type = #tpu.core_type<tc>, window_params = [{transform_indices = @transform_0, window_bounds = array<i64: 1, 8, 32>}, {pipeline_mode = #tpu.pipeline_mode<synchronous>, transform_indices = @transform_1, window_bounds = array<i64: 4, 3, 32, 8>}, {pipeline_mode = #tpu.pipeline_mode<synchronous>, transform_indices = @transform_2, window_bounds = array<i64: 4, 3, 1, 8>}, {pipeline_mode = #tpu.pipeline_mode<synchronous>, transform_indices = @transform_3, window_bounds = array<i64: 4, 8, 32>}, {pipeline_mode = #tpu.pipeline_mode<synchronous>, transform_indices = @transform_4, window_bounds = array<i64: 32, 32>}, {pipeline_mode = #tpu.pipeline_mode<synchronous>, transform_indices = @transform_5, window_bounds = array<i64: 32, 32>}, {pipeline_mode = #tpu.pipeline_mode<synchronous>, transform_indices = @transform_6, window_bounds = array<i64: 7, 1, 32>}, {transform_indices = @transform_7, window_bounds = array<i64: 1, 8, 32>}]} {
    %c0 = arith.constant 0 : index
    %c0_0 = arith.constant 0 : index
    %c0_1 = arith.constant 0 : index
    %0 = vector.load %arg1[%c0, %c0_0, %c0_1] : memref<1x8x32xf32, #tpu.memory_space<vmem>>, vector<1x8x32xf32>
    %1 = vector.shape_cast %0 : vector<1x8x32xf32> to vector<8x32xf32>
    %c0_2 = arith.constant 0 : index
    %c0_3 = arith.constant 0 : index
    %c0_4 = arith.constant 0 : index
    %2 = vector.load %arg7[%c0_2, %c0_3, %c0_4] : memref<7x1x32xf32, #tpu.memory_space<vmem>>, vector<1x1x32xf32>
    %3 = vector.shape_cast %2 : vector<1x1x32xf32> to vector<1x32xf32>
    %c1 = arith.constant 1 : index
    %c0_5 = arith.constant 0 : index
    %c0_6 = arith.constant 0 : index
    %4 = vector.load %arg7[%c1, %c0_5, %c0_6] : memref<7x1x32xf32, #tpu.memory_space<vmem>>, vector<1x1x32xf32>
    %5 = vector.shape_cast %4 : vector<1x1x32xf32> to vector<1x32xf32>
    %c2 = arith.constant 2 : index
    %c0_7 = arith.constant 0 : index
    %c0_8 = arith.constant 0 : index
    %6 = vector.load %arg7[%c2, %c0_7, %c0_8] : memref<7x1x32xf32, #tpu.memory_space<vmem>>, vector<1x1x32xf32>
    %7 = vector.shape_cast %6 : vector<1x1x32xf32> to vector<1x32xf32>
    %c3 = arith.constant 3 : index
    %c0_9 = arith.constant 0 : index
    %c0_10 = arith.constant 0 : index
    %8 = vector.load %arg7[%c3, %c0_9, %c0_10] : memref<7x1x32xf32, #tpu.memory_space<vmem>>, vector<1x1x32xf32>
    %9 = vector.shape_cast %8 : vector<1x1x32xf32> to vector<1x32xf32>
    %c4 = arith.constant 4 : index
    %c0_11 = arith.constant 0 : index
    %c0_12 = arith.constant 0 : index
    %10 = vector.load %arg7[%c4, %c0_11, %c0_12] : memref<7x1x32xf32, #tpu.memory_space<vmem>>, vector<1x1x32xf32>
    %11 = vector.shape_cast %10 : vector<1x1x32xf32> to vector<1x32xf32>
    %c5 = arith.constant 5 : index
    %c0_13 = arith.constant 0 : index
    %c0_14 = arith.constant 0 : index
    %12 = vector.load %arg7[%c5, %c0_13, %c0_14] : memref<7x1x32xf32, #tpu.memory_space<vmem>>, vector<1x1x32xf32>
    %13 = vector.shape_cast %12 : vector<1x1x32xf32> to vector<1x32xf32>
    %c6 = arith.constant 6 : index
    %c0_15 = arith.constant 0 : index
    %c0_16 = arith.constant 0 : index
    %14 = vector.load %arg7[%c6, %c0_15, %c0_16] : memref<7x1x32xf32, #tpu.memory_space<vmem>>, vector<1x1x32xf32>
    %15 = vector.shape_cast %14 : vector<1x1x32xf32> to vector<1x32xf32>
    %cst = arith.constant dense<0.000000e+00> : vector<8xf32>
    %16 = vector.multi_reduction <add>, %1, %cst [1] : vector<8x32xf32> to vector<8xf32>
    %17 = vector.shape_cast %16 : vector<8xf32> to vector<8x1xf32>
    %cst_17 = arith.constant 3.200000e+01 : f32
    %18 = vector.broadcast %cst_17 : f32 to vector<8x1xf32>
    %19 = arith.divf %17, %18 : vector<8x1xf32>
    %20 = vector.broadcast %19 : vector<8x1xf32> to vector<8x32xf32>
    %21 = arith.subf %1, %20 : vector<8x32xf32>
    %22 = vector.broadcast %19 : vector<8x1xf32> to vector<8x32xf32>
    %23 = arith.subf %1, %22 : vector<8x32xf32>
    %24 = arith.mulf %21, %23 : vector<8x32xf32>
    %cst_18 = arith.constant dense<0.000000e+00> : vector<8xf32>
    %25 = vector.multi_reduction <add>, %24, %cst_18 [1] : vector<8x32xf32> to vector<8xf32>
    %26 = vector.shape_cast %25 : vector<8xf32> to vector<8x1xf32>
    %cst_19 = arith.constant 3.200000e+01 : f32
    %27 = vector.broadcast %cst_19 : f32 to vector<8x1xf32>
    %28 = arith.divf %26, %27 : vector<8x1xf32>
    %cst_20 = arith.constant 9.99999974E-6 : f32
    %29 = vector.broadcast %cst_20 : f32 to vector<8x1xf32>
    %30 = arith.addf %28, %29 : vector<8x1xf32>
    %31 = math.rsqrt %30 : vector<8x1xf32>
    %32 = vector.broadcast %19 : vector<8x1xf32> to vector<8x32xf32>
    %33 = arith.subf %1, %32 : vector<8x32xf32>
    %34 = vector.broadcast %31 : vector<8x1xf32> to vector<8x32xf32>
    %35 = arith.mulf %33, %34 : vector<8x32xf32>
    %36 = vector.broadcast %3 : vector<1x32xf32> to vector<8x32xf32>
    %37 = arith.mulf %35, %36 : vector<8x32xf32>
    %38 = vector.broadcast %5 : vector<1x32xf32> to vector<8x32xf32>
    %39 = arith.addf %37, %38 : vector<8x32xf32>
    %40 = arith.truncf %39 : vector<8x32xf32> to vector<8x32xbf16>
    %41 = tpu.iota {dimensions = array<i32: 0>} : vector<8x8xi32>
    %42 = tpu.iota {dimensions = array<i32: 1>} : vector<8x8xi32>
    %43 = arith.cmpi sle, %42, %41 : vector<8x8xi32>
    %cst_21 = arith.constant 0.000000e+00 : f32
    %cst_22 = arith.constant -1.000000e+30 : f32
    %44 = vector.broadcast %cst_21 : f32 to vector<8x8xf32>
    %45 = vector.broadcast %cst_22 : f32 to vector<8x8xf32>
    %46 = arith.select %43, %44, %45 : vector<8x8xi1>, vector<8x8xf32>
    %cst_23 = arith.constant 0.000000e+00 : f32
    %47 = vector.broadcast %cst_23 : f32 to vector<8x32xf32>
    %c0_24 = arith.constant 0 : index
    %c0_25 = arith.constant 0 : index
    %c0_26 = arith.constant 0 : index
    %c0_27 = arith.constant 0 : index
    %48 = vector.load %arg2[%c0_24, %c0_25, %c0_26, %c0_27] : memref<4x3x32x8xbf16, #tpu.memory_space<vmem>>, vector<1x1x32x8xbf16>
    %49 = vector.shape_cast %48 : vector<1x1x32x8xbf16> to vector<32x8xbf16>
    %cst_28 = arith.constant dense<0.000000e+00> : vector<8x8xf32>
    %50 = tpu.matmul %40, %49, %cst_28 {dimension_numbers = #tpu.dot_dimension_numbers<[1], [0], [0], [1], [0, 0, 1, 1], [], []>} : vector<8x32xbf16>, vector<32x8xbf16>, vector<8x8xf32> -> vector<8x8xf32>
    %c0_29 = arith.constant 0 : index
    %c0_30 = arith.constant 0 : index
    %c0_31 = arith.constant 0 : index
    %c0_32 = arith.constant 0 : index
    %51 = vector.load %arg3[%c0_29, %c0_30, %c0_31, %c0_32] : memref<4x3x1x8xf32, #tpu.memory_space<vmem>>, vector<1x1x1x8xf32>
    %52 = vector.shape_cast %51 : vector<1x1x1x8xf32> to vector<1x8xf32>
    %53 = vector.broadcast %52 : vector<1x8xf32> to vector<8x8xf32>
    %54 = arith.addf %50, %53 : vector<8x8xf32>
    %c0_33 = arith.constant 0 : index
    %c1_34 = arith.constant 1 : index
    %c0_35 = arith.constant 0 : index
    %c0_36 = arith.constant 0 : index
    %55 = vector.load %arg2[%c0_33, %c1_34, %c0_35, %c0_36] : memref<4x3x32x8xbf16, #tpu.memory_space<vmem>>, vector<1x1x32x8xbf16>
    %56 = vector.shape_cast %55 : vector<1x1x32x8xbf16> to vector<32x8xbf16>
    %cst_37 = arith.constant dense<0.000000e+00> : vector<8x8xf32>
    %57 = tpu.matmul %40, %56, %cst_37 {dimension_numbers = #tpu.dot_dimension_numbers<[1], [0], [0], [1], [0, 0, 1, 1], [], []>} : vector<8x32xbf16>, vector<32x8xbf16>, vector<8x8xf32> -> vector<8x8xf32>
    %c0_38 = arith.constant 0 : index
    %c1_39 = arith.constant 1 : index
    %c0_40 = arith.constant 0 : index
    %c0_41 = arith.constant 0 : index
    %58 = vector.load %arg3[%c0_38, %c1_39, %c0_40, %c0_41] : memref<4x3x1x8xf32, #tpu.memory_space<vmem>>, vector<1x1x1x8xf32>
    %59 = vector.shape_cast %58 : vector<1x1x1x8xf32> to vector<1x8xf32>
    %60 = vector.broadcast %59 : vector<1x8xf32> to vector<8x8xf32>
    %61 = arith.addf %57, %60 : vector<8x8xf32>
    %c0_42 = arith.constant 0 : index
    %c2_43 = arith.constant 2 : index
    %c0_44 = arith.constant 0 : index
    %c0_45 = arith.constant 0 : index
    %62 = vector.load %arg2[%c0_42, %c2_43, %c0_44, %c0_45] : memref<4x3x32x8xbf16, #tpu.memory_space<vmem>>, vector<1x1x32x8xbf16>
    %63 = vector.shape_cast %62 : vector<1x1x32x8xbf16> to vector<32x8xbf16>
    %cst_46 = arith.constant dense<0.000000e+00> : vector<8x8xf32>
    %64 = tpu.matmul %40, %63, %cst_46 {dimension_numbers = #tpu.dot_dimension_numbers<[1], [0], [0], [1], [0, 0, 1, 1], [], []>} : vector<8x32xbf16>, vector<32x8xbf16>, vector<8x8xf32> -> vector<8x8xf32>
    %c0_47 = arith.constant 0 : index
    %c2_48 = arith.constant 2 : index
    %c0_49 = arith.constant 0 : index
    %c0_50 = arith.constant 0 : index
    %65 = vector.load %arg3[%c0_47, %c2_48, %c0_49, %c0_50] : memref<4x3x1x8xf32, #tpu.memory_space<vmem>>, vector<1x1x1x8xf32>
    %66 = vector.shape_cast %65 : vector<1x1x1x8xf32> to vector<1x8xf32>
    %67 = vector.broadcast %66 : vector<1x8xf32> to vector<8x8xf32>
    %68 = arith.addf %64, %67 : vector<8x8xf32>
    %69 = arith.truncf %54 : vector<8x8xf32> to vector<8x8xbf16>
    %70 = arith.truncf %61 : vector<8x8xf32> to vector<8x8xbf16>
    %cst_51 = arith.constant dense<0.000000e+00> : vector<8x8xf32>
    %71 = tpu.matmul %69, %70, %cst_51 {dimension_numbers = #tpu.dot_dimension_numbers<[1], [1], [0], [0], [0, 0, 1, 0], [], []>} : vector<8x8xbf16>, vector<8x8xbf16>, vector<8x8xf32> -> vector<8x8xf32>
    %72 = arith.addf %71, %46 : vector<8x8xf32>
    %cst_52 = arith.constant dense<0xFF800000> : vector<8xf32>
    %73 = vector.multi_reduction <maximumf>, %72, %cst_52 [1] : vector<8x8xf32> to vector<8xf32>
    %74 = vector.shape_cast %73 : vector<8xf32> to vector<8x1xf32>
    %75 = vector.broadcast %74 : vector<8x1xf32> to vector<8x8xf32>
    %76 = arith.subf %72, %75 : vector<8x8xf32>
    %77 = math.exp %76 : vector<8x8xf32>
    %cst_53 = arith.constant dense<0.000000e+00> : vector<8xf32>
    %78 = vector.multi_reduction <add>, %77, %cst_53 [1] : vector<8x8xf32> to vector<8xf32>
    %79 = vector.shape_cast %78 : vector<8xf32> to vector<8x1xf32>
    %80 = tpu.reciprocal %79 {approx = true} : vector<8x1xf32> -> vector<8x1xf32>
    %81 = vector.broadcast %80 : vector<8x1xf32> to vector<8x8xf32>
    %82 = arith.mulf %77, %81 : vector<8x8xf32>
    %83 = arith.truncf %82 : vector<8x8xf32> to vector<8x8xbf16>
    %84 = arith.truncf %68 : vector<8x8xf32> to vector<8x8xbf16>
    %cst_54 = arith.constant dense<0.000000e+00> : vector<8x8xf32>
    %85 = tpu.matmul %83, %84, %cst_54 {dimension_numbers = #tpu.dot_dimension_numbers<[1], [0], [0], [1], [0, 0, 1, 1], [], []>} : vector<8x8xbf16>, vector<8x8xbf16>, vector<8x8xf32> -> vector<8x8xf32>
    %86 = arith.truncf %85 : vector<8x8xf32> to vector<8x8xbf16>
    %c0_55 = arith.constant 0 : index
    %c0_56 = arith.constant 0 : index
    %c0_57 = arith.constant 0 : index
    %87 = vector.load %arg4[%c0_55, %c0_56, %c0_57] : memref<4x8x32xbf16, #tpu.memory_space<vmem>>, vector<1x8x32xbf16>
    %88 = vector.shape_cast %87 : vector<1x8x32xbf16> to vector<8x32xbf16>
    %cst_58 = arith.constant dense<0.000000e+00> : vector<8x32xf32>
    %89 = tpu.matmul %86, %88, %cst_58 {dimension_numbers = #tpu.dot_dimension_numbers<[1], [0], [0], [1], [0, 0, 1, 1], [], []>} : vector<8x8xbf16>, vector<8x32xbf16>, vector<8x32xf32> -> vector<8x32xf32>
    %90 = arith.addf %47, %89 : vector<8x32xf32>
    %c1_59 = arith.constant 1 : index
    %c0_60 = arith.constant 0 : index
    %c0_61 = arith.constant 0 : index
    %c0_62 = arith.constant 0 : index
    %91 = vector.load %arg2[%c1_59, %c0_60, %c0_61, %c0_62] : memref<4x3x32x8xbf16, #tpu.memory_space<vmem>>, vector<1x1x32x8xbf16>
    %92 = vector.shape_cast %91 : vector<1x1x32x8xbf16> to vector<32x8xbf16>
    %cst_63 = arith.constant dense<0.000000e+00> : vector<8x8xf32>
    %93 = tpu.matmul %40, %92, %cst_63 {dimension_numbers = #tpu.dot_dimension_numbers<[1], [0], [0], [1], [0, 0, 1, 1], [], []>} : vector<8x32xbf16>, vector<32x8xbf16>, vector<8x8xf32> -> vector<8x8xf32>
    %c1_64 = arith.constant 1 : index
    %c0_65 = arith.constant 0 : index
    %c0_66 = arith.constant 0 : index
    %c0_67 = arith.constant 0 : index
    %94 = vector.load %arg3[%c1_64, %c0_65, %c0_66, %c0_67] : memref<4x3x1x8xf32, #tpu.memory_space<vmem>>, vector<1x1x1x8xf32>
    %95 = vector.shape_cast %94 : vector<1x1x1x8xf32> to vector<1x8xf32>
    %96 = vector.broadcast %95 : vector<1x8xf32> to vector<8x8xf32>
    %97 = arith.addf %93, %96 : vector<8x8xf32>
    %c1_68 = arith.constant 1 : index
    %c1_69 = arith.constant 1 : index
    %c0_70 = arith.constant 0 : index
    %c0_71 = arith.constant 0 : index
    %98 = vector.load %arg2[%c1_68, %c1_69, %c0_70, %c0_71] : memref<4x3x32x8xbf16, #tpu.memory_space<vmem>>, vector<1x1x32x8xbf16>
    %99 = vector.shape_cast %98 : vector<1x1x32x8xbf16> to vector<32x8xbf16>
    %cst_72 = arith.constant dense<0.000000e+00> : vector<8x8xf32>
    %100 = tpu.matmul %40, %99, %cst_72 {dimension_numbers = #tpu.dot_dimension_numbers<[1], [0], [0], [1], [0, 0, 1, 1], [], []>} : vector<8x32xbf16>, vector<32x8xbf16>, vector<8x8xf32> -> vector<8x8xf32>
    %c1_73 = arith.constant 1 : index
    %c1_74 = arith.constant 1 : index
    %c0_75 = arith.constant 0 : index
    %c0_76 = arith.constant 0 : index
    %101 = vector.load %arg3[%c1_73, %c1_74, %c0_75, %c0_76] : memref<4x3x1x8xf32, #tpu.memory_space<vmem>>, vector<1x1x1x8xf32>
    %102 = vector.shape_cast %101 : vector<1x1x1x8xf32> to vector<1x8xf32>
    %103 = vector.broadcast %102 : vector<1x8xf32> to vector<8x8xf32>
    %104 = arith.addf %100, %103 : vector<8x8xf32>
    %c1_77 = arith.constant 1 : index
    %c2_78 = arith.constant 2 : index
    %c0_79 = arith.constant 0 : index
    %c0_80 = arith.constant 0 : index
    %105 = vector.load %arg2[%c1_77, %c2_78, %c0_79, %c0_80] : memref<4x3x32x8xbf16, #tpu.memory_space<vmem>>, vector<1x1x32x8xbf16>
    %106 = vector.shape_cast %105 : vector<1x1x32x8xbf16> to vector<32x8xbf16>
    %cst_81 = arith.constant dense<0.000000e+00> : vector<8x8xf32>
    %107 = tpu.matmul %40, %106, %cst_81 {dimension_numbers = #tpu.dot_dimension_numbers<[1], [0], [0], [1], [0, 0, 1, 1], [], []>} : vector<8x32xbf16>, vector<32x8xbf16>, vector<8x8xf32> -> vector<8x8xf32>
    %c1_82 = arith.constant 1 : index
    %c2_83 = arith.constant 2 : index
    %c0_84 = arith.constant 0 : index
    %c0_85 = arith.constant 0 : index
    %108 = vector.load %arg3[%c1_82, %c2_83, %c0_84, %c0_85] : memref<4x3x1x8xf32, #tpu.memory_space<vmem>>, vector<1x1x1x8xf32>
    %109 = vector.shape_cast %108 : vector<1x1x1x8xf32> to vector<1x8xf32>
    %110 = vector.broadcast %109 : vector<1x8xf32> to vector<8x8xf32>
    %111 = arith.addf %107, %110 : vector<8x8xf32>
    %112 = arith.truncf %97 : vector<8x8xf32> to vector<8x8xbf16>
    %113 = arith.truncf %104 : vector<8x8xf32> to vector<8x8xbf16>
    %cst_86 = arith.constant dense<0.000000e+00> : vector<8x8xf32>
    %114 = tpu.matmul %112, %113, %cst_86 {dimension_numbers = #tpu.dot_dimension_numbers<[1], [1], [0], [0], [0, 0, 1, 0], [], []>} : vector<8x8xbf16>, vector<8x8xbf16>, vector<8x8xf32> -> vector<8x8xf32>
    %115 = arith.addf %114, %46 : vector<8x8xf32>
    %cst_87 = arith.constant dense<0xFF800000> : vector<8xf32>
    %116 = vector.multi_reduction <maximumf>, %115, %cst_87 [1] : vector<8x8xf32> to vector<8xf32>
    %117 = vector.shape_cast %116 : vector<8xf32> to vector<8x1xf32>
    %118 = vector.broadcast %117 : vector<8x1xf32> to vector<8x8xf32>
    %119 = arith.subf %115, %118 : vector<8x8xf32>
    %120 = math.exp %119 : vector<8x8xf32>
    %cst_88 = arith.constant dense<0.000000e+00> : vector<8xf32>
    %121 = vector.multi_reduction <add>, %120, %cst_88 [1] : vector<8x8xf32> to vector<8xf32>
    %122 = vector.shape_cast %121 : vector<8xf32> to vector<8x1xf32>
    %123 = tpu.reciprocal %122 {approx = true} : vector<8x1xf32> -> vector<8x1xf32>
    %124 = vector.broadcast %123 : vector<8x1xf32> to vector<8x8xf32>
    %125 = arith.mulf %120, %124 : vector<8x8xf32>
    %126 = arith.truncf %125 : vector<8x8xf32> to vector<8x8xbf16>
    %127 = arith.truncf %111 : vector<8x8xf32> to vector<8x8xbf16>
    %cst_89 = arith.constant dense<0.000000e+00> : vector<8x8xf32>
    %128 = tpu.matmul %126, %127, %cst_89 {dimension_numbers = #tpu.dot_dimension_numbers<[1], [0], [0], [1], [0, 0, 1, 1], [], []>} : vector<8x8xbf16>, vector<8x8xbf16>, vector<8x8xf32> -> vector<8x8xf32>
    %129 = arith.truncf %128 : vector<8x8xf32> to vector<8x8xbf16>
    %c1_90 = arith.constant 1 : index
    %c0_91 = arith.constant 0 : index
    %c0_92 = arith.constant 0 : index
    %130 = vector.load %arg4[%c1_90, %c0_91, %c0_92] : memref<4x8x32xbf16, #tpu.memory_space<vmem>>, vector<1x8x32xbf16>
    %131 = vector.shape_cast %130 : vector<1x8x32xbf16> to vector<8x32xbf16>
    %cst_93 = arith.constant dense<0.000000e+00> : vector<8x32xf32>
    %132 = tpu.matmul %129, %131, %cst_93 {dimension_numbers = #tpu.dot_dimension_numbers<[1], [0], [0], [1], [0, 0, 1, 1], [], []>} : vector<8x8xbf16>, vector<8x32xbf16>, vector<8x32xf32> -> vector<8x32xf32>
    %133 = arith.addf %90, %132 : vector<8x32xf32>
    %c2_94 = arith.constant 2 : index
    %c0_95 = arith.constant 0 : index
    %c0_96 = arith.constant 0 : index
    %c0_97 = arith.constant 0 : index
    %134 = vector.load %arg2[%c2_94, %c0_95, %c0_96, %c0_97] : memref<4x3x32x8xbf16, #tpu.memory_space<vmem>>, vector<1x1x32x8xbf16>
    %135 = vector.shape_cast %134 : vector<1x1x32x8xbf16> to vector<32x8xbf16>
    %cst_98 = arith.constant dense<0.000000e+00> : vector<8x8xf32>
    %136 = tpu.matmul %40, %135, %cst_98 {dimension_numbers = #tpu.dot_dimension_numbers<[1], [0], [0], [1], [0, 0, 1, 1], [], []>} : vector<8x32xbf16>, vector<32x8xbf16>, vector<8x8xf32> -> vector<8x8xf32>
    %c2_99 = arith.constant 2 : index
    %c0_100 = arith.constant 0 : index
    %c0_101 = arith.constant 0 : index
    %c0_102 = arith.constant 0 : index
    %137 = vector.load %arg3[%c2_99, %c0_100, %c0_101, %c0_102] : memref<4x3x1x8xf32, #tpu.memory_space<vmem>>, vector<1x1x1x8xf32>
    %138 = vector.shape_cast %137 : vector<1x1x1x8xf32> to vector<1x8xf32>
    %139 = vector.broadcast %138 : vector<1x8xf32> to vector<8x8xf32>
    %140 = arith.addf %136, %139 : vector<8x8xf32>
    %c2_103 = arith.constant 2 : index
    %c1_104 = arith.constant 1 : index
    %c0_105 = arith.constant 0 : index
    %c0_106 = arith.constant 0 : index
    %141 = vector.load %arg2[%c2_103, %c1_104, %c0_105, %c0_106] : memref<4x3x32x8xbf16, #tpu.memory_space<vmem>>, vector<1x1x32x8xbf16>
    %142 = vector.shape_cast %141 : vector<1x1x32x8xbf16> to vector<32x8xbf16>
    %cst_107 = arith.constant dense<0.000000e+00> : vector<8x8xf32>
    %143 = tpu.matmul %40, %142, %cst_107 {dimension_numbers = #tpu.dot_dimension_numbers<[1], [0], [0], [1], [0, 0, 1, 1], [], []>} : vector<8x32xbf16>, vector<32x8xbf16>, vector<8x8xf32> -> vector<8x8xf32>
    %c2_108 = arith.constant 2 : index
    %c1_109 = arith.constant 1 : index
    %c0_110 = arith.constant 0 : index
    %c0_111 = arith.constant 0 : index
    %144 = vector.load %arg3[%c2_108, %c1_109, %c0_110, %c0_111] : memref<4x3x1x8xf32, #tpu.memory_space<vmem>>, vector<1x1x1x8xf32>
    %145 = vector.shape_cast %144 : vector<1x1x1x8xf32> to vector<1x8xf32>
    %146 = vector.broadcast %145 : vector<1x8xf32> to vector<8x8xf32>
    %147 = arith.addf %143, %146 : vector<8x8xf32>
    %c2_112 = arith.constant 2 : index
    %c2_113 = arith.constant 2 : index
    %c0_114 = arith.constant 0 : index
    %c0_115 = arith.constant 0 : index
    %148 = vector.load %arg2[%c2_112, %c2_113, %c0_114, %c0_115] : memref<4x3x32x8xbf16, #tpu.memory_space<vmem>>, vector<1x1x32x8xbf16>
    %149 = vector.shape_cast %148 : vector<1x1x32x8xbf16> to vector<32x8xbf16>
    %cst_116 = arith.constant dense<0.000000e+00> : vector<8x8xf32>
    %150 = tpu.matmul %40, %149, %cst_116 {dimension_numbers = #tpu.dot_dimension_numbers<[1], [0], [0], [1], [0, 0, 1, 1], [], []>} : vector<8x32xbf16>, vector<32x8xbf16>, vector<8x8xf32> -> vector<8x8xf32>
    %c2_117 = arith.constant 2 : index
    %c2_118 = arith.constant 2 : index
    %c0_119 = arith.constant 0 : index
    %c0_120 = arith.constant 0 : index
    %151 = vector.load %arg3[%c2_117, %c2_118, %c0_119, %c0_120] : memref<4x3x1x8xf32, #tpu.memory_space<vmem>>, vector<1x1x1x8xf32>
    %152 = vector.shape_cast %151 : vector<1x1x1x8xf32> to vector<1x8xf32>
    %153 = vector.broadcast %152 : vector<1x8xf32> to vector<8x8xf32>
    %154 = arith.addf %150, %153 : vector<8x8xf32>
    %155 = arith.truncf %140 : vector<8x8xf32> to vector<8x8xbf16>
    %156 = arith.truncf %147 : vector<8x8xf32> to vector<8x8xbf16>
    %cst_121 = arith.constant dense<0.000000e+00> : vector<8x8xf32>
    %157 = tpu.matmul %155, %156, %cst_121 {dimension_numbers = #tpu.dot_dimension_numbers<[1], [1], [0], [0], [0, 0, 1, 0], [], []>} : vector<8x8xbf16>, vector<8x8xbf16>, vector<8x8xf32> -> vector<8x8xf32>
    %158 = arith.addf %157, %46 : vector<8x8xf32>
    %cst_122 = arith.constant dense<0xFF800000> : vector<8xf32>
    %159 = vector.multi_reduction <maximumf>, %158, %cst_122 [1] : vector<8x8xf32> to vector<8xf32>
    %160 = vector.shape_cast %159 : vector<8xf32> to vector<8x1xf32>
    %161 = vector.broadcast %160 : vector<8x1xf32> to vector<8x8xf32>
    %162 = arith.subf %158, %161 : vector<8x8xf32>
    %163 = math.exp %162 : vector<8x8xf32>
    %cst_123 = arith.constant dense<0.000000e+00> : vector<8xf32>
    %164 = vector.multi_reduction <add>, %163, %cst_123 [1] : vector<8x8xf32> to vector<8xf32>
    %165 = vector.shape_cast %164 : vector<8xf32> to vector<8x1xf32>
    %166 = tpu.reciprocal %165 {approx = true} : vector<8x1xf32> -> vector<8x1xf32>
    %167 = vector.broadcast %166 : vector<8x1xf32> to vector<8x8xf32>
    %168 = arith.mulf %163, %167 : vector<8x8xf32>
    %169 = arith.truncf %168 : vector<8x8xf32> to vector<8x8xbf16>
    %170 = arith.truncf %154 : vector<8x8xf32> to vector<8x8xbf16>
    %cst_124 = arith.constant dense<0.000000e+00> : vector<8x8xf32>
    %171 = tpu.matmul %169, %170, %cst_124 {dimension_numbers = #tpu.dot_dimension_numbers<[1], [0], [0], [1], [0, 0, 1, 1], [], []>} : vector<8x8xbf16>, vector<8x8xbf16>, vector<8x8xf32> -> vector<8x8xf32>
    %172 = arith.truncf %171 : vector<8x8xf32> to vector<8x8xbf16>
    %c2_125 = arith.constant 2 : index
    %c0_126 = arith.constant 0 : index
    %c0_127 = arith.constant 0 : index
    %173 = vector.load %arg4[%c2_125, %c0_126, %c0_127] : memref<4x8x32xbf16, #tpu.memory_space<vmem>>, vector<1x8x32xbf16>
    %174 = vector.shape_cast %173 : vector<1x8x32xbf16> to vector<8x32xbf16>
    %cst_128 = arith.constant dense<0.000000e+00> : vector<8x32xf32>
    %175 = tpu.matmul %172, %174, %cst_128 {dimension_numbers = #tpu.dot_dimension_numbers<[1], [0], [0], [1], [0, 0, 1, 1], [], []>} : vector<8x8xbf16>, vector<8x32xbf16>, vector<8x32xf32> -> vector<8x32xf32>
    %176 = arith.addf %133, %175 : vector<8x32xf32>
    %c3_129 = arith.constant 3 : index
    %c0_130 = arith.constant 0 : index
    %c0_131 = arith.constant 0 : index
    %c0_132 = arith.constant 0 : index
    %177 = vector.load %arg2[%c3_129, %c0_130, %c0_131, %c0_132] : memref<4x3x32x8xbf16, #tpu.memory_space<vmem>>, vector<1x1x32x8xbf16>
    %178 = vector.shape_cast %177 : vector<1x1x32x8xbf16> to vector<32x8xbf16>
    %cst_133 = arith.constant dense<0.000000e+00> : vector<8x8xf32>
    %179 = tpu.matmul %40, %178, %cst_133 {dimension_numbers = #tpu.dot_dimension_numbers<[1], [0], [0], [1], [0, 0, 1, 1], [], []>} : vector<8x32xbf16>, vector<32x8xbf16>, vector<8x8xf32> -> vector<8x8xf32>
    %c3_134 = arith.constant 3 : index
    %c0_135 = arith.constant 0 : index
    %c0_136 = arith.constant 0 : index
    %c0_137 = arith.constant 0 : index
    %180 = vector.load %arg3[%c3_134, %c0_135, %c0_136, %c0_137] : memref<4x3x1x8xf32, #tpu.memory_space<vmem>>, vector<1x1x1x8xf32>
    %181 = vector.shape_cast %180 : vector<1x1x1x8xf32> to vector<1x8xf32>
    %182 = vector.broadcast %181 : vector<1x8xf32> to vector<8x8xf32>
    %183 = arith.addf %179, %182 : vector<8x8xf32>
    %c3_138 = arith.constant 3 : index
    %c1_139 = arith.constant 1 : index
    %c0_140 = arith.constant 0 : index
    %c0_141 = arith.constant 0 : index
    %184 = vector.load %arg2[%c3_138, %c1_139, %c0_140, %c0_141] : memref<4x3x32x8xbf16, #tpu.memory_space<vmem>>, vector<1x1x32x8xbf16>
    %185 = vector.shape_cast %184 : vector<1x1x32x8xbf16> to vector<32x8xbf16>
    %cst_142 = arith.constant dense<0.000000e+00> : vector<8x8xf32>
    %186 = tpu.matmul %40, %185, %cst_142 {dimension_numbers = #tpu.dot_dimension_numbers<[1], [0], [0], [1], [0, 0, 1, 1], [], []>} : vector<8x32xbf16>, vector<32x8xbf16>, vector<8x8xf32> -> vector<8x8xf32>
    %c3_143 = arith.constant 3 : index
    %c1_144 = arith.constant 1 : index
    %c0_145 = arith.constant 0 : index
    %c0_146 = arith.constant 0 : index
    %187 = vector.load %arg3[%c3_143, %c1_144, %c0_145, %c0_146] : memref<4x3x1x8xf32, #tpu.memory_space<vmem>>, vector<1x1x1x8xf32>
    %188 = vector.shape_cast %187 : vector<1x1x1x8xf32> to vector<1x8xf32>
    %189 = vector.broadcast %188 : vector<1x8xf32> to vector<8x8xf32>
    %190 = arith.addf %186, %189 : vector<8x8xf32>
    %c3_147 = arith.constant 3 : index
    %c2_148 = arith.constant 2 : index
    %c0_149 = arith.constant 0 : index
    %c0_150 = arith.constant 0 : index
    %191 = vector.load %arg2[%c3_147, %c2_148, %c0_149, %c0_150] : memref<4x3x32x8xbf16, #tpu.memory_space<vmem>>, vector<1x1x32x8xbf16>
    %192 = vector.shape_cast %191 : vector<1x1x32x8xbf16> to vector<32x8xbf16>
    %cst_151 = arith.constant dense<0.000000e+00> : vector<8x8xf32>
    %193 = tpu.matmul %40, %192, %cst_151 {dimension_numbers = #tpu.dot_dimension_numbers<[1], [0], [0], [1], [0, 0, 1, 1], [], []>} : vector<8x32xbf16>, vector<32x8xbf16>, vector<8x8xf32> -> vector<8x8xf32>
    %c3_152 = arith.constant 3 : index
    %c2_153 = arith.constant 2 : index
    %c0_154 = arith.constant 0 : index
    %c0_155 = arith.constant 0 : index
    %194 = vector.load %arg3[%c3_152, %c2_153, %c0_154, %c0_155] : memref<4x3x1x8xf32, #tpu.memory_space<vmem>>, vector<1x1x1x8xf32>
    %195 = vector.shape_cast %194 : vector<1x1x1x8xf32> to vector<1x8xf32>
    %196 = vector.broadcast %195 : vector<1x8xf32> to vector<8x8xf32>
    %197 = arith.addf %193, %196 : vector<8x8xf32>
    %198 = arith.truncf %183 : vector<8x8xf32> to vector<8x8xbf16>
    %199 = arith.truncf %190 : vector<8x8xf32> to vector<8x8xbf16>
    %cst_156 = arith.constant dense<0.000000e+00> : vector<8x8xf32>
    %200 = tpu.matmul %198, %199, %cst_156 {dimension_numbers = #tpu.dot_dimension_numbers<[1], [1], [0], [0], [0, 0, 1, 0], [], []>} : vector<8x8xbf16>, vector<8x8xbf16>, vector<8x8xf32> -> vector<8x8xf32>
    %201 = arith.addf %200, %46 : vector<8x8xf32>
    %cst_157 = arith.constant dense<0xFF800000> : vector<8xf32>
    %202 = vector.multi_reduction <maximumf>, %201, %cst_157 [1] : vector<8x8xf32> to vector<8xf32>
    %203 = vector.shape_cast %202 : vector<8xf32> to vector<8x1xf32>
    %204 = vector.broadcast %203 : vector<8x1xf32> to vector<8x8xf32>
    %205 = arith.subf %201, %204 : vector<8x8xf32>
    %206 = math.exp %205 : vector<8x8xf32>
    %cst_158 = arith.constant dense<0.000000e+00> : vector<8xf32>
    %207 = vector.multi_reduction <add>, %206, %cst_158 [1] : vector<8x8xf32> to vector<8xf32>
    %208 = vector.shape_cast %207 : vector<8xf32> to vector<8x1xf32>
    %209 = tpu.reciprocal %208 {approx = true} : vector<8x1xf32> -> vector<8x1xf32>
    %210 = vector.broadcast %209 : vector<8x1xf32> to vector<8x8xf32>
    %211 = arith.mulf %206, %210 : vector<8x8xf32>
    %212 = arith.truncf %211 : vector<8x8xf32> to vector<8x8xbf16>
    %213 = arith.truncf %197 : vector<8x8xf32> to vector<8x8xbf16>
    %cst_159 = arith.constant dense<0.000000e+00> : vector<8x8xf32>
    %214 = tpu.matmul %212, %213, %cst_159 {dimension_numbers = #tpu.dot_dimension_numbers<[1], [0], [0], [1], [0, 0, 1, 1], [], []>} : vector<8x8xbf16>, vector<8x8xbf16>, vector<8x8xf32> -> vector<8x8xf32>
    %215 = arith.truncf %214 : vector<8x8xf32> to vector<8x8xbf16>
    %c3_160 = arith.constant 3 : index
    %c0_161 = arith.constant 0 : index
    %c0_162 = arith.constant 0 : index
    %216 = vector.load %arg4[%c3_160, %c0_161, %c0_162] : memref<4x8x32xbf16, #tpu.memory_space<vmem>>, vector<1x8x32xbf16>
    %217 = vector.shape_cast %216 : vector<1x8x32xbf16> to vector<8x32xbf16>
    %cst_163 = arith.constant dense<0.000000e+00> : vector<8x32xf32>
    %218 = tpu.matmul %215, %217, %cst_163 {dimension_numbers = #tpu.dot_dimension_numbers<[1], [0], [0], [1], [0, 0, 1, 1], [], []>} : vector<8x8xbf16>, vector<8x32xbf16>, vector<8x32xf32> -> vector<8x32xf32>
    %219 = arith.addf %176, %218 : vector<8x32xf32>
    %220 = arith.addf %1, %219 : vector<8x32xf32>
    %221 = vector.broadcast %11 : vector<1x32xf32> to vector<8x32xf32>
    %222 = arith.addf %220, %221 : vector<8x32xf32>
    %cst_164 = arith.constant dense<0.000000e+00> : vector<8xf32>
    %223 = vector.multi_reduction <add>, %222, %cst_164 [1] : vector<8x32xf32> to vector<8xf32>
    %224 = vector.shape_cast %223 : vector<8xf32> to vector<8x1xf32>
    %cst_165 = arith.constant 3.200000e+01 : f32
    %225 = vector.broadcast %cst_165 : f32 to vector<8x1xf32>
    %226 = arith.divf %224, %225 : vector<8x1xf32>
    %227 = vector.broadcast %226 : vector<8x1xf32> to vector<8x32xf32>
    %228 = arith.subf %222, %227 : vector<8x32xf32>
    %229 = vector.broadcast %226 : vector<8x1xf32> to vector<8x32xf32>
    %230 = arith.subf %222, %229 : vector<8x32xf32>
    %231 = arith.mulf %228, %230 : vector<8x32xf32>
    %cst_166 = arith.constant dense<0.000000e+00> : vector<8xf32>
    %232 = vector.multi_reduction <add>, %231, %cst_166 [1] : vector<8x32xf32> to vector<8xf32>
    %233 = vector.shape_cast %232 : vector<8xf32> to vector<8x1xf32>
    %cst_167 = arith.constant 3.200000e+01 : f32
    %234 = vector.broadcast %cst_167 : f32 to vector<8x1xf32>
    %235 = arith.divf %233, %234 : vector<8x1xf32>
    %cst_168 = arith.constant 9.99999974E-6 : f32
    %236 = vector.broadcast %cst_168 : f32 to vector<8x1xf32>
    %237 = arith.addf %235, %236 : vector<8x1xf32>
    %238 = math.rsqrt %237 : vector<8x1xf32>
    %239 = vector.broadcast %226 : vector<8x1xf32> to vector<8x32xf32>
    %240 = arith.subf %222, %239 : vector<8x32xf32>
    %241 = vector.broadcast %238 : vector<8x1xf32> to vector<8x32xf32>
    %242 = arith.mulf %240, %241 : vector<8x32xf32>
    %243 = vector.broadcast %7 : vector<1x32xf32> to vector<8x32xf32>
    %244 = arith.mulf %242, %243 : vector<8x32xf32>
    %245 = vector.broadcast %9 : vector<1x32xf32> to vector<8x32xf32>
    %246 = arith.addf %244, %245 : vector<8x32xf32>
    %247 = arith.truncf %246 : vector<8x32xf32> to vector<8x32xbf16>
    %c0_169 = arith.constant 0 : index
    %c0_170 = arith.constant 0 : index
    %248 = vector.load %arg5[%c0_169, %c0_170] : memref<32x32xbf16, #tpu.memory_space<vmem>>, vector<32x32xbf16>
    %cst_171 = arith.constant dense<0.000000e+00> : vector<8x32xf32>
    %249 = tpu.matmul %247, %248, %cst_171 {dimension_numbers = #tpu.dot_dimension_numbers<[1], [0], [0], [1], [0, 0, 1, 1], [], []>} : vector<8x32xbf16>, vector<32x32xbf16>, vector<8x32xf32> -> vector<8x32xf32>
    %250 = vector.broadcast %13 : vector<1x32xf32> to vector<8x32xf32>
    %251 = arith.addf %249, %250 : vector<8x32xf32>
    %cst_172 = arith.constant 0.000000e+00 : f32
    %252 = vector.broadcast %cst_172 : f32 to vector<8x32xf32>
    %253 = arith.maximumf %251, %252 : vector<8x32xf32>
    %254 = arith.truncf %253 : vector<8x32xf32> to vector<8x32xbf16>
    %c0_173 = arith.constant 0 : index
    %c0_174 = arith.constant 0 : index
    %255 = vector.load %arg6[%c0_173, %c0_174] : memref<32x32xbf16, #tpu.memory_space<vmem>>, vector<32x32xbf16>
    %cst_175 = arith.constant dense<0.000000e+00> : vector<8x32xf32>
    %256 = tpu.matmul %254, %255, %cst_175 {dimension_numbers = #tpu.dot_dimension_numbers<[1], [0], [0], [1], [0, 0, 1, 1], [], []>} : vector<8x32xbf16>, vector<32x32xbf16>, vector<8x32xf32> -> vector<8x32xf32>
    %257 = vector.broadcast %15 : vector<1x32xf32> to vector<8x32xf32>
    %258 = arith.addf %256, %257 : vector<8x32xf32>
    %259 = arith.addf %222, %258 : vector<8x32xf32>
    %c0_176 = arith.constant 0 : index
    %c0_177 = arith.constant 0 : index
    %c0_178 = arith.constant 0 : index
    %260 = vector.load %arg8[%c0_176, %c0_177, %c0_178] : memref<1x8x32xf32, #tpu.memory_space<vmem>>, vector<1x8x32xf32>
    %261 = vector.shape_cast %260 : vector<1x8x32xf32> to vector<8x32xf32>
    %262 = vector.shape_cast %259 : vector<8x32xf32> to vector<1x8x32xf32>
    tpu.vector_store %arg8[%c0_176, %c0_177, %c0_178], %262 {strides = array<i32>} : memref<1x8x32xf32, #tpu.memory_space<vmem>>, vector<1x8x32xf32>,
    return
  }
  func.func @transform_0(%arg0: i32) -> (i32, i32, i32) {
    %c0_i32 = arith.constant 0 : i32
    %c0_i32_0 = arith.constant 0 : i32
    %c0_i32_1 = arith.constant 0 : i32
    return %arg0, %c0_i32, %c0_i32_0 : i32, i32, i32
  }
  func.func @transform_1(%arg0: i32) -> (i32, i32, i32, i32) {
    %c0_i32 = arith.constant 0 : i32
    %c0_i32_0 = arith.constant 0 : i32
    %c0_i32_1 = arith.constant 0 : i32
    %c0_i32_2 = arith.constant 0 : i32
    %c0_i32_3 = arith.constant 0 : i32
    return %c0_i32, %c0_i32_0, %c0_i32_1, %c0_i32_2 : i32, i32, i32, i32
  }
  func.func @transform_2(%arg0: i32) -> (i32, i32, i32, i32) {
    %c0_i32 = arith.constant 0 : i32
    %c0_i32_0 = arith.constant 0 : i32
    %c0_i32_1 = arith.constant 0 : i32
    %c0_i32_2 = arith.constant 0 : i32
    %c0_i32_3 = arith.constant 0 : i32
    return %c0_i32, %c0_i32_0, %c0_i32_1, %c0_i32_2 : i32, i32, i32, i32
  }
  func.func @transform_3(%arg0: i32) -> (i32, i32, i32) {
    %c0_i32 = arith.constant 0 : i32
    %c0_i32_0 = arith.constant 0 : i32
    %c0_i32_1 = arith.constant 0 : i32
    %c0_i32_2 = arith.constant 0 : i32
    return %c0_i32, %c0_i32_0, %c0_i32_1 : i32, i32, i32
  }
  func.func @transform_4(%arg0: i32) -> (i32, i32) {
    %c0_i32 = arith.constant 0 : i32
    %c0_i32_0 = arith.constant 0 : i32
    %c0_i32_1 = arith.constant 0 : i32
    return %c0_i32, %c0_i32_0 : i32, i32
  }
  func.func @transform_5(%arg0: i32) -> (i32, i32) {
    %c0_i32 = arith.constant 0 : i32
    %c0_i32_0 = arith.constant 0 : i32
    %c0_i32_1 = arith.constant 0 : i32
    return %c0_i32, %c0_i32_0 : i32, i32
  }
  func.func @transform_6(%arg0: i32) -> (i32, i32, i32) {
    %c0_i32 = arith.constant 0 : i32
    %c0_i32_0 = arith.constant 0 : i32
    %c0_i32_1 = arith.constant 0 : i32
    %c0_i32_2 = arith.constant 0 : i32
    return %c0_i32, %c0_i32_0, %c0_i32_1 : i32, i32, i32
  }
  func.func @transform_7(%arg0: i32) -> (i32, i32, i32) {
    %c0_i32 = arith.constant 0 : i32
    %c0_i32_0 = arith.constant 0 : i32
    %c0_i32_1 = arith.constant 0 : i32
    return %arg0, %c0_i32, %c0_i32_0 : i32, i32, i32
  }
}

</mosaic_0001>

<llo_original>
// kernel: transformer_block.1
$region0: #{transformer_block.1}
  #allocation0 [shape = 'u32[]', space=smem, size = 0x4, offset = 0x4, fixed_abs, tag = 'smem constant byte address 0x4 - core index']
  #allocation1 [shape = 'u32[144,128]{1,0:T(1,128)}', space=vmem, size = 0x12000, scoped, tag = 'internal scratch']
  %s0 = inlined_call_operand.vmem [shape: f32[2,8,32], index: 0, kind: input, shape index: {}]
  %s1 = inlined_call_operand.vmem [shape: bf16[4,3,32,8], index: 1, kind: input, shape index: {}]
  %s2 = inlined_call_operand.vmem [shape: f32[4,3,1,8], index: 2, kind: input, shape index: {}]
  %s3 = inlined_call_operand.vmem [shape: bf16[4,8,32], index: 3, kind: input, shape index: {}]
  %s4 = inlined_call_operand.vmem [shape: bf16[32,32], index: 4, kind: input, shape index: {}]
  %s5 = inlined_call_operand.vmem [shape: bf16[32,32], index: 5, kind: input, shape index: {}]
  %s6 = inlined_call_operand.vmem [shape: f32[7,1,32], index: 6, kind: input, shape index: {}]
  %s7 = inlined_call_operand.hbm [shape: f32[2,8,32], index: 7, kind: output, shape index: {}]
  %s8 = sld [smem:[#allocation0]]
  $region61: #{transformer_block.1} parent=0
    _
  %s10 = ssub.s32 1, %s8
  %s11 = scalar_select 0, %s10, %s8
  $region1: #{transformer_block.1} parent=0
    #allocation2 [shape = 'u8[8192]{0}', space=vmem, size = 0x2000, scoped, tag = 'output window, operand 0']
    #allocation3 [shape = 's32[2]{0}', space=sflag, size = 0x8, scoped, tag = 'scoped memory for transformer_block.1']
    %12 = vsyncpa [#allocation3], 0
    %s13 = scalar_lea.sflag [#allocation3], 1
    %14 = vsyncpa %s13, 0
    loop: start=0, step=1, limit=4
    $region2: #{transformer_block.1} parent=1 // loop_pre_header
      _
    $region3: #{transformer_block.1} parent=1 // loop_header
      %s16 = sphi 0, %s20
      %p17 = scmp.ge.s32.totalorder %s16, 4
      %s26 = sphi 0, %s28
      %s29 = sphi 0, %s26
      %s30 = sphi 0, %s29
      %s46 = sphi 0, %s30
      %s50 = sphi 0, %s50
      %s52 = sphi 0, %s50
      %s53 = sphi 0, %s52
      %s67 = sphi 0, %s53
      %s71 = sphi 0, %s71
      %s73 = sphi 0, %s71
      %s74 = sphi 0, %s73
      %s88 = sphi 0, %s74
      %s92 = sphi 0, %s92
      %s94 = sphi 0, %s92
      %s95 = sphi 0, %s94
      %s109 = sphi 0, %s95
      %s113 = sphi 0, %s113
      %s115 = sphi 0, %s113
      %s116 = sphi 0, %s115
      %s130 = sphi 0, %s116
      %s134 = sphi 0, %s134
      %s136 = sphi 0, %s134
      %s137 = sphi 0, %s136
      %s151 = sphi 0, %s137
      %s155 = sphi 0, %s155
      %s157 = sphi 0, %s155
      %s158 = sphi 0, %s157
      %s172 = sphi 0, %s158
      %s178 = sphi 0, %s180
      %s181 = sphi 0, %s178
      %s182 = sphi 0, %s181
      %s198 = sphi 0, %s182
    $region4: #{transformer_block.1} parent=1 // loop_header_branch
      %19 = sbr.rel (%p17) target = $region8
    $region5: #{transformer_block.1} parent=1 // loop_body
      %s21 = ssub.s32 %s16, 1
      %s22 = ssub.s32 %s16, 2
      %s23 = sadd.s32 %s16, 1
      %s24 = ssub.s32 %s16, %s23
      %p25 = scmp.eq.s32.totalorder %s24, 0
      %s27 = sadd.s32 %s26, 1
      %s28 = scalar_select %p25, %s26, %s27
      %p31 = pneg %p25
      %p32 = scmp.eq.s32.totalorder %s16, 1
      %p33 = por %p31, %p32
      %p34 = scmp.ne.s32.totalorder %s26, %s29
      %p35 = scmp.eq.s32.totalorder %s16, 0
      %p36 = por %p34, %p35
      %p37 = scmp.ne.s32.totalorder %s26, %s29
      %p38 = scmp.eq.s32.totalorder %s21, 1
      %p39 = por %p37, %p38
      %p40 = scmp.ne.s32.totalorder %s29, %s30
      %p41 = scmp.eq.s32.totalorder %s21, 0
      %p42 = por %p40, %p41
      %p43 = scmp.ne.s32.totalorder %s29, %s30
      %p44 = scmp.eq.s32.totalorder %s22, 1
      %p45 = por %p43, %p44
      %p47 = scmp.ne.s32.totalorder %s30, %s46
      %p48 = scmp.eq.s32.totalorder %s22, 0
      %p49 = por %p47, %p48
      %s51 = sadd.s32 %s50, 1
      %p54 = scmp.eq.s32.totalorder %s16, 1
      %p55 = scmp.ne.s32.totalorder %s50, %s52
      %p56 = scmp.eq.s32.totalorder %s16, 0
      %p57 = por %p55, %p56
      %p58 = scmp.ne.s32.totalorder %s50, %s52
      %p59 = scmp.eq.s32.totalorder %s21, 1
      %p60 = por %p58, %p59
      %p61 = scmp.ne.s32.totalorder %s52, %s53
      %p62 = scmp.eq.s32.totalorder %s21, 0
      %p63 = por %p61, %p62
      %p64 = scmp.ne.s32.totalorder %s52, %s53
      %p65 = scmp.eq.s32.totalorder %s22, 1
      %p66 = por %p64, %p65
      %p68 = scmp.ne.s32.totalorder %s53, %s67
      %p69 = scmp.eq.s32.totalorder %s22, 0
      %p70 = por %p68, %p69
      %s72 = sadd.s32 %s71, 1
      %p75 = scmp.eq.s32.totalorder %s16, 1
      %p76 = scmp.ne.s32.totalorder %s71, %s73
      %p77 = scmp.eq.s32.totalorder %s16, 0
      %p78 = por %p76, %p77
      %p79 = scmp.ne.s32.totalorder %s71, %s73
      %p80 = scmp.eq.s32.totalorder %s21, 1
      %p81 = por %p79, %p80
      %p82 = scmp.ne.s32.totalorder %s73, %s74
      %p83 = scmp.eq.s32.totalorder %s21, 0
      %p84 = por %p82, %p83
      %p85 = scmp.ne.s32.totalorder %s73, %s74
      %p86 = scmp.eq.s32.totalorder %s22, 1
      %p87 = por %p85, %p86
      %p89 = scmp.ne.s32.totalorder %s74, %s88
      %p90 = scmp.eq.s32.totalorder %s22, 0
      %p91 = por %p89, %p90
      %s93 = sadd.s32 %s92, 1
      %p96 = scmp.eq.s32.totalorder %s16, 1
      %p97 = scmp.ne.s32.totalorder %s92, %s94
      %p98 = scmp.eq.s32.totalorder %s16, 0
      %p99 = por %p97, %p98
      %p100 = scmp.ne.s32.totalorder %s92, %s94
      %p101 = scmp.eq.s32.totalorder %s21, 1
      %p102 = por %p100, %p101
      %p103 = scmp.ne.s32.totalorder %s94, %s95
      %p104 = scmp.eq.s32.totalorder %s21, 0
      %p105 = por %p103, %p104
      %p106 = scmp.ne.s32.totalorder %s94, %s95
      %p107 = scmp.eq.s32.totalorder %s22, 1
      %p108 = por %p106, %p107
      %p110 = scmp.ne.s32.totalorder %s95, %s109
      %p111 = scmp.eq.s32.totalorder %s22, 0
      %p112 = por %p110, %p111
      %s114 = sadd.s32 %s113, 1
      %p117 = scmp.eq.s32.totalorder %s16, 1
      %p118 = scmp.ne.s32.totalorder %s113, %s115
      %p119 = scmp.eq.s32.totalorder %s16, 0
      %p120 = por %p118, %p119
      %p121 = scmp.ne.s32.totalorder %s113, %s115
      %p122 = scmp.eq.s32.totalorder %s21, 1
      %p123 = por %p121, %p122
      %p124 = scmp.ne.s32.totalorder %s115, %s116
      %p125 = scmp.eq.s32.totalorder %s21, 0
      %p126 = por %p124, %p125
      %p127 = scmp.ne.s32.totalorder %s115, %s116
      %p128 = scmp.eq.s32.totalorder %s22, 1
      %p129 = por %p127, %p128
      %p131 = scmp.ne.s32.totalorder %s116, %s130
      %p132 = scmp.eq.s32.totalorder %s22, 0
      %p133 = por %p131, %p132
      %s135 = sadd.s32 %s134, 1
      %p138 = scmp.eq.s32.totalorder %s16, 1
      %p139 = scmp.ne.s32.totalorder %s134, %s136
      %p140 = scmp.eq.s32.totalorder %s16, 0
      %p141 = por %p139, %p140
      %p142 = scmp.ne.s32.totalorder %s134, %s136
      %p143 = scmp.eq.s32.totalorder %s21, 1
      %p144 = por %p142, %p143
      %p145 = scmp.ne.s32.totalorder %s136, %s137
      %p146 = scmp.eq.s32.totalorder %s21, 0
      %p147 = por %p145, %p146
      %p148 = scmp.ne.s32.totalorder %s136, %s137
      %p149 = scmp.eq.s32.totalorder %s22, 1
      %p150 = por %p148, %p149
      %p152 = scmp.ne.s32.totalorder %s137, %s151
      %p153 = scmp.eq.s32.totalorder %s22, 0
      %p154 = por %p152, %p153
      %s156 = sadd.s32 %s155, 1
      %p159 = scmp.eq.s32.totalorder %s16, 1
      %p160 = scmp.ne.s32.totalorder %s155, %s157
      %p161 = scmp.eq.s32.totalorder %s16, 0
      %p162 = por %p160, %p161
      %p163 = scmp.ne.s32.totalorder %s155, %s157
      %p164 = scmp.eq.s32.totalorder %s21, 1
      %p165 = por %p163, %p164
      %p166 = scmp.ne.s32.totalorder %s157, %s158
      %p167 = scmp.eq.s32.totalorder %s21, 0
      %p168 = por %p166, %p167
      %p169 = scmp.ne.s32.totalorder %s157, %s158
      %p170 = scmp.eq.s32.totalorder %s22, 1
      %p171 = por %p169, %p170
      %p173 = scmp.ne.s32.totalorder %s158, %s172
      %p174 = scmp.eq.s32.totalorder %s22, 0
      %p175 = por %p173, %p174
      %s176 = ssub.s32 %s16, %s23
      %p177 = scmp.eq.s32.totalorder %s176, 0
      %s179 = sadd.s32 %s178, 1
      %s180 = scalar_select %p177, %s178, %s179
      %p183 = pneg %p177
      %p184 = scmp.eq.s32.totalorder %s16, 1
      %p185 = por %p183, %p184
      %p186 = scmp.ne.s32.totalorder %s178, %s181
      %p187 = scmp.eq.s32.totalorder %s16, 0
      %p188 = por %p186, %p187
      %p189 = scmp.ne.s32.totalorder %s178, %s181
      %p190 = scmp.eq.s32.totalorder %s21, 1
      %p191 = por %p189, %p190
      %p192 = scmp.ne.s32.totalorder %s181, %s182
      %p193 = scmp.eq.s32.totalorder %s21, 0
      %p194 = por %p192, %p193
      %p195 = scmp.ne.s32.totalorder %s181, %s182
      %p196 = scmp.eq.s32.totalorder %s22, 1
      %p197 = por %p195, %p196
      %p199 = scmp.ne.s32.totalorder %s182, %s198
      %p200 = scmp.eq.s32.totalorder %s22, 0
      %p201 = por %p199, %p200
      %p202 = scmp.le.s32.totalorder 1, %s16
      %p203 = scmp.lt.s32.totalorder %s16, 3
      %p204 = pnand %p202, %p203
      %p205 = pneg %p204
      // Predicated region
      $region9: #{transformer_block.1} parent=5 // pred_check
        _
      $region10: #{transformer_block.1} parent=5 // pred_check_branch
        %207 = sbr.rel (%p204) target = $region12
      $region11: #{transformer_block.1} parent=5 // pred_region
        %s208 = ssub.s32 %s16, 1
        // Predicated region
        $region13: #{transformer_block.1} parent=11 // pred_check
          %p209 = pneg %p63
        $region14: #{transformer_block.1} parent=11 // pred_check_branch
          %211 = sbr.rel (%p209) target = $region16
        $region15: #{transformer_block.1} parent=11 // pred_region
          _
        $region16: #{transformer_block.1} parent=11 // pred_fallthru
          _
        // Predicated region
        $region17: #{transformer_block.1} parent=11 // pred_check
          %p212 = pneg %p84
        $region18: #{transformer_block.1} parent=11 // pred_check_branch
          %214 = sbr.rel (%p212) target = $region20
        $region19: #{transformer_block.1} parent=11 // pred_region
          _
        $region20: #{transformer_block.1} parent=11 // pred_fallthru
          _
        // Predicated region
        $region21: #{transformer_block.1} parent=11 // pred_check
          %p215 = pneg %p105
        $region22: #{transformer_block.1} parent=11 // pred_check_branch
          %217 = sbr.rel (%p215) target = $region24
        $region23: #{transformer_block.1} parent=11 // pred_region
          _
        $region24: #{transformer_block.1} parent=11 // pred_fallthru
          _
        // Predicated region
        $region25: #{transformer_block.1} parent=11 // pred_check
          %p218 = pneg %p126
        $region26: #{transformer_block.1} parent=11 // pred_check_branch
          %220 = sbr.rel (%p218) target = $region28
        $region27: #{transformer_block.1} parent=11 // pred_region
          _
        $region28: #{transformer_block.1} parent=11 // pred_fallthru
          _
        // Predicated region
        $region29: #{transformer_block.1} parent=11 // pred_check
          %p221 = pneg %p147
        $region30: #{transformer_block.1} parent=11 // pred_check_branch
          %223 = sbr.rel (%p221) target = $region32
        $region31: #{transformer_block.1} parent=11 // pred_region
          _
        $region32: #{transformer_block.1} parent=11 // pred_fallthru
          _
        // Predicated region
        $region33: #{transformer_block.1} parent=11 // pred_check
          %p224 = pneg %p168
        $region34: #{transformer_block.1} parent=11 // pred_check_branch
          %226 = sbr.rel (%p224) target = $region36
        $region35: #{transformer_block.1} parent=11 // pred_region
          _
        $region36: #{transformer_block.1} parent=11 // pred_fallthru
          _
      $region12: #{transformer_block.1} parent=5 // pred_fallthru
        _
      %p227 = scmp.lt.s32.totalorder %s16, 2
      // Predicated region
      $region37: #{transformer_block.1} parent=5 // pred_check
        %p228 = pneg %p227
      $region38: #{transformer_block.1} parent=5 // pred_check_branch
        %230 = sbr.rel (%p228) target = $region40
      $region39: #{transformer_block.1} parent=5 // pred_region
        // Predicated region
        $region41: #{transformer_block.1} parent=39 // pred_check
          %p231 = pneg %p36
        $region42: #{transformer_block.1} parent=39 // pred_check_branch
          %233 = sbr.rel (%p231) target = $region44
        $region43: #{transformer_block.1} parent=39 // pred_region
          %p234 = scmp.lt.s32.totalorder %s16, 1
          %s235 = scalar_select %p234, %s16, 1
          %s236 = smul.addr %s235, 8
          %s237 = scalar_lea.vmem %s0, %s236
        $region44: #{transformer_block.1} parent=39 // pred_fallthru
          _
      $region40: #{transformer_block.1} parent=5 // pred_fallthru
        _
      %p238 = scmp.le.s32.totalorder 1, %s16
      %p239 = scmp.lt.s32.totalorder %s16, 3
      %p240 = pnand %p238, %p239
      %p241 = pneg %p240
      // Predicated region
      $region45: #{transformer_block.1} parent=5 // pred_check
        _
      $region46: #{transformer_block.1} parent=5 // pred_check_branch
        %243 = sbr.rel (%p240) target = $region48
      $region47: #{transformer_block.1} parent=5 // pred_region
        %s244 = ssub.s32 %s16, 1
        %p245 = scmp.lt.s32.totalorder %s21, 1
        %s246 = scalar_select %p245, %s21, 1
        %s247 = smul.addr %s246, 8
        %s248 = scalar_lea.vmem %s0, %s247
        %p249 = pneg %p42
        %p250 = pneg %p39
        %p251 = pneg %p63
        %p252 = pneg %p60
        %p253 = pneg %p84
        %p254 = pneg %p81
        %p255 = pneg %p105
        %p256 = pneg %p102
        %p257 = pneg %p126
        %p258 = pneg %p123
        %p259 = pneg %p147
        %p260 = pneg %p144
        %p261 = pneg %p168
        %p262 = pneg %p165
        %p263 = pneg %p194
        %p264 = pneg %p191
        %s265 = sand.u32 %s181, 1
        %s266 = scalar_lea.sflag [#allocation3], %s265
        %s267 = sand.u32 %s181, 1
        %s268 = smul.addr %s267, 8
        %s269 = scalar_lea.vmem [#allocation2], %s268
        %p270 = scmp.lt.s32.totalorder %s21, 1
        %s271 = scalar_select %p270, %s21, 1
        %s272 = smul.addr %s271, 8
        %s273 = scalar_lea.vmem %s0, %s272
        %v275 = vld [vmem:[%s273] sm:$0xff]
        %v276 = vld [vmem:[%s6] sm:$0x1]
        %s277 = scalar_lea.vmem %s6, 1
        %v278 = vld [vmem:[%s277] sm:$0x1]
        %s279 = scalar_lea.vmem %s6, 2
        %v280 = vld [vmem:[%s279] sm:$0x1]
        %s281 = scalar_lea.vmem %s6, 3
        %v282 = vld [vmem:[%s281] sm:$0x1]
        %s283 = scalar_lea.vmem %s6, 4
        %v284 = vld [vmem:[%s283] sm:$0x1]
        %s285 = scalar_lea.vmem %s6, 5
        %v286 = vld [vmem:[%s285] sm:$0x1]
        %s287 = scalar_lea.vmem %s6, 6
        %v288 = vld [vmem:[%s287] sm:$0x1]
        %vm289 = vcmask 261120
        %v290 = vsel %vm289, %v275, 0.0
        %291 = vadd.xlane.f32.xlu0 %v290
        %v292 = vpop.xlane.xlu0 %291
        %v293 = vrcp.pop 32.0
        %v294 = vmul.f32 %v292, %v293
        %v295 = vsub.f32 %v275, %v294
        %v296 = vmul.f32 %v295, %v295
        %v297 = vsel %vm289, %v296, 0.0
        %298 = vadd.xlane.f32.xlu0 %v297
        %v299 = vpop.xlane.xlu0 %298
        %v300 = vmul.f32 %v299, %v293
        %v301 = vadd.f32 %v300, 1e-05
        %v302 = vrsqrt.pop %v301
        %v303 = vmul.f32 %v295, %v302
        %v305 = vlaneseq
        %v306 = vshrl.u32 %v305, 7
        %v307 = vsub.s32 0, %v306
        %v308 = vrot.slane %v276, %v307
        %v310 = vmul.f32 %v303, %v308
        %v312 = vlaneseq
        %v313 = vshrl.u32 %v312, 7
        %v314 = vsub.s32 0, %v313
        %v315 = vrot.slane %v278, %v314
        %v317 = vadd.f32 %v310, %v315
        %v318 = vpack.c.bf16 %v317, %v317
        %v319 = vlaneseq
        %v320 = vshrl.u32 %v319, 7
        %v321 = vlaneseq
        %v322 = vand.u32 %v321, 127
        %vm323 = vcmp.le.s32.totalorder %v322, %v320
        %v324 = vsel %vm323, 0.0, -1e+30
        %v325 = vld [vmem:[%s1] sm:$0xf]
        %v326 = vld [vmem:[%s1 + $0x4] sm:$0xf]
        %v327 = vld [vmem:[%s1 + $0x8] sm:$0xf]
        %v328 = vld [vmem:[%s1 + $0xc] sm:$0xf]
        %v329 = vld [vmem:[%s2] sm:$0x1]
        %v331 = vlaneseq
        %v332 = vshrl.u32 %v331, 7
        %v333 = vsub.s32 0, %v332
        %v334 = vrot.slane %v329, %v333
        %v340 = vunpack.c.l.b16 %v325
        %v341 = vunpack.c.l.b16 %v326
        %v342 = vunpack.c.l.b16 %v327
        %v343 = vunpack.c.l.b16 %v328
        %v344 = vpack.c.b16 %v341, %v340
        %v345 = vpack.c.b16 %v343, %v342
        %v349 = vsel %vm289, %v318, 0
        %351 = vmatprep.subr.bf16.mxu0 0
        %352 = vmatpush1.bf16.msra.mxu0 %v344
        %353 = vmatprep.subr.bf16.mxu0 0
        %354 = vmatpush1.bf16.msra.mxu0 %v345
        %355 = vmatprep.subr.bf16.mxu0 0
        %356 = vmatpush1.bf16.msra.mxu0 0
        %357 = vmatprep.subr.bf16.mxu0 0
        %358 = vmatpush1.bf16.msra.mxu0 0
        %359 = vmatprep.subr.bf16.mxu0 0
        %360 = vmatpush1.bf16.msra.mxu0 0
        %361 = vmatprep.subr.bf16.mxu0 0
        %362 = vmatpush1.bf16.msra.mxu0 0
        %363 = vmatprep.subr.bf16.mxu0 0
        %364 = vmatpush1.bf16.msra.mxu0 0
        %365 = vmatprep.subr.bf16.mxu0 0
        %366 = vmatpush1.bf16.msra.mxu0 0
        %367 = vmatprep.subr.bf16.mxu0 0
        %368 = vmatpush1.bf16.msra.mxu0 0
        %369 = vmatprep.subr.bf16.mxu0 0
        %370 = vmatpush1.bf16.msra.mxu0 0
        %371 = vmatprep.subr.bf16.mxu0 0
        %372 = vmatpush1.bf16.msra.mxu0 0
        %373 = vmatprep.subr.bf16.mxu0 0
        %374 = vmatpush1.bf16.msra.mxu0 0
        %375 = vmatprep.subr.bf16.mxu0 0
        %376 = vmatpush1.bf16.msra.mxu0 0
        %377 = vmatprep.subr.bf16.mxu0 0
        %378 = vmatpush1.bf16.msra.mxu0 0
        %379 = vmatprep.subr.bf16.mxu0 0
        %380 = vmatpush1.bf16.msra.mxu0 0
        %381 = vmatprep.subr.bf16.mxu0 0
        %382 = vmatpush1.bf16.msra.mxu0 0
        %383 = vmatprep.mubr.bf16.mxu0 0
        %384 = vmatmul.mubr.bf16.gmra.mrb[0].mxu0 %v349
        %v385 = vpop.f32.mrb[0].mxu0
        %v386 = vadd.f32 %v334, %v385
        %v387 = vpop.f32.mrb[0].mxu0
        %v388 = vpop.f32.mrb[0].mxu0
        %v389 = vpop.f32.mrb[0].mxu0
        %390 = vdwg.mxu0
        %s391 = scalar_lea.vmem %s1, 16
        %v392 = vld [vmem:[%s391] sm:$0xf]
        %v393 = vld [vmem:[%s391 + $0x4] sm:$0xf]
        %v394 = vld [vmem:[%s391 + $0x8] sm:$0xf]
        %v395 = vld [vmem:[%s391 + $0xc] sm:$0xf]
        %s396 = scalar_lea.vmem %s2, 1
        %v397 = vld [vmem:[%s396] sm:$0x1]
        %v399 = vlaneseq
        %v400 = vshrl.u32 %v399, 7
        %v401 = vsub.s32 0, %v400
        %v402 = vrot.slane %v397, %v401
        %v408 = vunpack.c.l.b16 %v392
        %v409 = vunpack.c.l.b16 %v393
        %v410 = vunpack.c.l.b16 %v394
        %v411 = vunpack.c.l.b16 %v395
        %v412 = vpack.c.b16 %v409, %v408
        %v413 = vpack.c.b16 %v411, %v410
        %416 = vmatprep.subr.bf16.mxu0 0
        %417 = vmatpush1.bf16.msra.mxu0 %v412
        %418 = vmatprep.subr.bf16.mxu0 0
        %419 = vmatpush1.bf16.msra.mxu0 %v413
        %420 = vmatprep.subr.bf16.mxu0 0
        %421 = vmatpush1.bf16.msra.mxu0 0
        %422 = vmatprep.subr.bf16.mxu0 0
        %423 = vmatpush1.bf16.msra.mxu0 0
        %424 = vmatprep.subr.bf16.mxu0 0
        %425 = vmatpush1.bf16.msra.mxu0 0
        %426 = vmatprep.subr.bf16.mxu0 0
        %427 = vmatpush1.bf16.msra.mxu0 0
        %428 = vmatprep.subr.bf16.mxu0 0
        %429 = vmatpush1.bf16.msra.mxu0 0
        %430 = vmatprep.subr.bf16.mxu0 0
        %431 = vmatpush1.bf16.msra.mxu0 0
        %432 = vmatprep.subr.bf16.mxu0 0
        %433 = vmatpush1.bf16.msra.mxu0 0
        %434 = vmatprep.subr.bf16.mxu0 0
        %435 = vmatpush1.bf16.msra.mxu0 0
        %436 = vmatprep.subr.bf16.mxu0 0
        %437 = vmatpush1.bf16.msra.mxu0 0
        %438 = vmatprep.subr.bf16.mxu0 0
        %439 = vmatpush1.bf16.msra.mxu0 0
        %440 = vmatprep.subr.bf16.mxu0 0
        %441 = vmatpush1.bf16.msra.mxu0 0
        %442 = vmatprep.subr.bf16.mxu0 0
        %443 = vmatpush1.bf16.msra.mxu0 0
        %444 = vmatprep.subr.bf16.mxu0 0
        %445 = vmatpush1.bf16.msra.mxu0 0
        %446 = vmatprep.subr.bf16.mxu0 0
        %447 = vmatpush1.bf16.msra.mxu0 0
        %448 = vmatprep.mubr.bf16.mxu0 0
        %449 = vmatmul.mubr.bf16.gmra.mrb[0].mxu0 %v349
        %v450 = vpop.f32.mrb[0].mxu0
        %v451 = vadd.f32 %v402, %v450
        %v452 = vpop.f32.mrb[0].mxu0
        %v453 = vpop.f32.mrb[0].mxu0
        %v454 = vpop.f32.mrb[0].mxu0
        %455 = vdwg.mxu0
        %s456 = scalar_lea.vmem %s1, 32
        %v457 = vld [vmem:[%s456] sm:$0xf]
        %v458 = vld [vmem:[%s456 + $0x4] sm:$0xf]
        %v459 = vld [vmem:[%s456 + $0x8] sm:$0xf]
        %v460 = vld [vmem:[%s456 + $0xc] sm:$0xf]
        %s461 = scalar_lea.vmem %s2, 2
        %v462 = vld [vmem:[%s461] sm:$0x1]
        %v464 = vlaneseq
        %v465 = vshrl.u32 %v464, 7
        %v466 = vsub.s32 0, %v465
        %v467 = vrot.slane %v462, %v466
        %v473 = vunpack.c.l.b16 %v457
        %v474 = vunpack.c.l.b16 %v458
        %v475 = vunpack.c.l.b16 %v459
        %v476 = vunpack.c.l.b16 %v460
        %v477 = vpack.c.b16 %v474, %v473
        %v478 = vpack.c.b16 %v476, %v475
        %481 = vmatprep.subr.bf16.mxu0 0
        %482 = vmatpush1.bf16.msra.mxu0 %v477
        %483 = vmatprep.subr.bf16.mxu0 0
        %484 = vmatpush1.bf16.msra.mxu0 %v478
        %485 = vmatprep.subr.bf16.mxu0 0
        %486 = vmatpush1.bf16.msra.mxu0 0
        %487 = vmatprep.subr.bf16.mxu0 0
        %488 = vmatpush1.bf16.msra.mxu0 0
        %489 = vmatprep.subr.bf16.mxu0 0
        %490 = vmatpush1.bf16.msra.mxu0 0
        %491 = vmatprep.subr.bf16.mxu0 0
        %492 = vmatpush1.bf16.msra.mxu0 0
        %493 = vmatprep.subr.bf16.mxu0 0
        %494 = vmatpush1.bf16.msra.mxu0 0
        %495 = vmatprep.subr.bf16.mxu0 0
        %496 = vmatpush1.bf16.msra.mxu0 0
        %497 = vmatprep.subr.bf16.mxu0 0
        %498 = vmatpush1.bf16.msra.mxu0 0
        %499 = vmatprep.subr.bf16.mxu0 0
        %500 = vmatpush1.bf16.msra.mxu0 0
        %501 = vmatprep.subr.bf16.mxu0 0
        %502 = vmatpush1.bf16.msra.mxu0 0
        %503 = vmatprep.subr.bf16.mxu0 0
        %504 = vmatpush1.bf16.msra.mxu0 0
        %505 = vmatprep.subr.bf16.mxu0 0
        %506 = vmatpush1.bf16.msra.mxu0 0
        %507 = vmatprep.subr.bf16.mxu0 0
        %508 = vmatpush1.bf16.msra.mxu0 0
        %509 = vmatprep.subr.bf16.mxu0 0
        %510 = vmatpush1.bf16.msra.mxu0 0
        %511 = vmatprep.subr.bf16.mxu0 0
        %512 = vmatpush1.bf16.msra.mxu0 0
        %513 = vmatprep.mubr.bf16.mxu0 0
        %514 = vmatmul.mubr.bf16.gmra.mrb[0].mxu0 %v349
        %v515 = vpop.f32.mrb[0].mxu0
        %v516 = vadd.f32 %v467, %v515
        %v517 = vpop.f32.mrb[0].mxu0
        %v518 = vpop.f32.mrb[0].mxu0
        %v519 = vpop.f32.mrb[0].mxu0
        %520 = vdwg.mxu0
        %v521 = vpack.c.bf16 %v386, %v386
        %v522 = vpack.c.bf16 %v451, %v451
        %vm523 = vcmask 64512
        %v525 = vsel %vm523, %v521, 0
        %v528 = vsel %vm523, %v522, 0
        %530 = vmatprep.subr.bf16.mxu0 0
        %531 = vmatpush1.bf16.xpose.msra.mxu0 %v528
        %532 = vmatprep.subr.bf16.mxu0 0
        %533 = vmatpush1.bf16.xpose.msra.mxu0 0
        %534 = vmatprep.subr.bf16.mxu0 0
        %535 = vmatpush1.bf16.xpose.msra.mxu0 0
        %536 = vmatprep.subr.bf16.mxu0 0
        %537 = vmatpush1.bf16.xpose.msra.mxu0 0
        %538 = vmatprep.subr.bf16.mxu0 0
        %539 = vmatpush1.bf16.xpose.msra.mxu0 0
        %540 = vmatprep.subr.bf16.mxu0 0
        %541 = vmatpush1.bf16.xpose.msra.mxu0 0
        %542 = vmatprep.subr.bf16.mxu0 0
        %543 = vmatpush1.bf16.xpose.msra.mxu0 0
        %544 = vmatprep.subr.bf16.mxu0 0
        %545 = vmatpush1.bf16.xpose.msra.mxu0 0
        %546 = vmatprep.subr.bf16.mxu0 0
        %547 = vmatpush1.bf16.xpose.msra.mxu0 0
        %548 = vmatprep.subr.bf16.mxu0 0
        %549 = vmatpush1.bf16.xpose.msra.mxu0 0
        %550 = vmatprep.subr.bf16.mxu0 0
        %551 = vmatpush1.bf16.xpose.msra.mxu0 0
        %552 = vmatprep.subr.bf16.mxu0 0
        %553 = vmatpush1.bf16.xpose.msra.mxu0 0
        %554 = vmatprep.subr.bf16.mxu0 0
        %555 = vmatpush1.bf16.xpose.msra.mxu0 0
        %556 = vmatprep.subr.bf16.mxu0 0
        %557 = vmatpush1.bf16.xpose.msra.mxu0 0
        %558 = vmatprep.subr.bf16.mxu0 0
        %559 = vmatpush1.bf16.xpose.msra.mxu0 0
        %560 = vmatprep.subr.bf16.mxu0 0
        %561 = vmatpush1.bf16.xpose.msra.mxu0 0
        %562 = vmatprep.mubr.bf16.mxu0 0
        %563 = vmatmul.mubr.bf16.gmra.mrb[0].mxu0 %v525
        %v564 = vpop.f32.mrb[0].mxu0
        %v565 = vadd.f32 %v324, %v564
        %v566 = vpop.f32.mrb[0].mxu0
        %v567 = vpop.f32.mrb[0].mxu0
        %v568 = vpop.f32.mrb[0].mxu0
        %569 = vdwg.mxu0
        %v570 = vsel %vm523, %v565, -inf
        %571 = vmax.xlane.f32.xlu0 %v570
        %v572 = vpop.xlane.xlu0 %571
        %v573 = vsub.f32 %v565, %v572
        %v574 = vmul.f32 %v573, 1.442695
        %v575 = vpow.pop %v574
        %v576 = vsel %vm523, %v575, 0.0
        %577 = vadd.xlane.f32.xlu0 %v576
        %v578 = vpop.xlane.xlu0 %577
        %v579 = vrcp.pop %v578
        %v580 = vmul.f32 %v575, %v579
        %v581 = vpack.c.bf16 %v580, %v580
        %v582 = vpack.c.bf16 %v516, %v516
        %v584 = vsel %vm523, %v581, 0
        %vm586 = vcmask 1043456
        %v588 = vsel %vm586, %v582, 0
        %590 = vmatprep.subr.bf16.mxu0 0
        %591 = vmatpush1.bf16.msra.mxu0 %v588
        %592 = vmatprep.subr.bf16.mxu0 0
        %593 = vmatpush1.bf16.msra.mxu0 0
        %594 = vmatprep.subr.bf16.mxu0 0
        %595 = vmatpush1.bf16.msra.mxu0 0
        %596 = vmatprep.subr.bf16.mxu0 0
        %597 = vmatpush1.bf16.msra.mxu0 0
        %598 = vmatprep.subr.bf16.mxu0 0
        %599 = vmatpush1.bf16.msra.mxu0 0
        %600 = vmatprep.subr.bf16.mxu0 0
        %601 = vmatpush1.bf16.msra.mxu0 0
        %602 = vmatprep.subr.bf16.mxu0 0
        %603 = vmatpush1.bf16.msra.mxu0 0
        %604 = vmatprep.subr.bf16.mxu0 0
        %605 = vmatpush1.bf16.msra.mxu0 0
        %606 = vmatprep.subr.bf16.mxu0 0
        %607 = vmatpush1.bf16.msra.mxu0 0
        %608 = vmatprep.subr.bf16.mxu0 0
        %609 = vmatpush1.bf16.msra.mxu0 0
        %610 = vmatprep.subr.bf16.mxu0 0
        %611 = vmatpush1.bf16.msra.mxu0 0
        %612 = vmatprep.subr.bf16.mxu0 0
        %613 = vmatpush1.bf16.msra.mxu0 0
        %614 = vmatprep.subr.bf16.mxu0 0
        %615 = vmatpush1.bf16.msra.mxu0 0
        %616 = vmatprep.subr.bf16.mxu0 0
        %617 = vmatpush1.bf16.msra.mxu0 0
        %618 = vmatprep.subr.bf16.mxu0 0
        %619 = vmatpush1.bf16.msra.mxu0 0
        %620 = vmatprep.subr.bf16.mxu0 0
        %621 = vmatpush1.bf16.msra.mxu0 0
        %622 = vmatprep.mubr.bf16.mxu0 0
        %623 = vmatmul.mubr.bf16.gmra.mrb[0].mxu0 %v584
        %v624 = vpop.f32.mrb[0].mxu0
        %v625 = vadd.f32 0.0, %v624
        %v626 = vpop.f32.mrb[0].mxu0
        %v627 = vpop.f32.mrb[0].mxu0
        %v628 = vpop.f32.mrb[0].mxu0
        %629 = vdwg.mxu0
        %v630 = vpack.c.bf16 %v625, %v625
        %v631 = vld [vmem:[%s3] sm:$0xf]
        %s632 = scalar_lea.vmem %s1, 48
        %v633 = vld [vmem:[%s632] sm:$0xf]
        %v634 = vld [vmem:[%s632 + $0x4] sm:$0xf]
        %v635 = vld [vmem:[%s632 + $0x8] sm:$0xf]
        %v636 = vld [vmem:[%s632 + $0xc] sm:$0xf]
        %s637 = scalar_lea.vmem %s2, 3
        %v638 = vld [vmem:[%s637] sm:$0x1]
        %v640 = vlaneseq
        %v641 = vshrl.u32 %v640, 7
        %v642 = vsub.s32 0, %v641
        %v643 = vrot.slane %v638, %v642
        %v649 = vunpack.c.l.b16 %v633
        %v650 = vunpack.c.l.b16 %v634
        %v651 = vunpack.c.l.b16 %v635
        %v652 = vunpack.c.l.b16 %v636
        %v653 = vpack.c.b16 %v650, %v649
        %v654 = vpack.c.b16 %v652, %v651
        %657 = vmatprep.subr.bf16.mxu0 0
        %658 = vmatpush1.bf16.msra.mxu0 %v653
        %659 = vmatprep.subr.bf16.mxu0 0
        %660 = vmatpush1.bf16.msra.mxu0 %v654
        %661 = vmatprep.subr.bf16.mxu0 0
        %662 = vmatpush1.bf16.msra.mxu0 0
        %663 = vmatprep.subr.bf16.mxu0 0
        %664 = vmatpush1.bf16.msra.mxu0 0
        %665 = vmatprep.subr.bf16.mxu0 0
        %666 = vmatpush1.bf16.msra.mxu0 0
        %667 = vmatprep.subr.bf16.mxu0 0
        %668 = vmatpush1.bf16.msra.mxu0 0
        %669 = vmatprep.subr.bf16.mxu0 0
        %670 = vmatpush1.bf16.msra.mxu0 0
        %671 = vmatprep.subr.bf16.mxu0 0
        %672 = vmatpush1.bf16.msra.mxu0 0
        %673 = vmatprep.subr.bf16.mxu0 0
        %674 = vmatpush1.bf16.msra.mxu0 0
        %675 = vmatprep.subr.bf16.mxu0 0
        %676 = vmatpush1.bf16.msra.mxu0 0
        %677 = vmatprep.subr.bf16.mxu0 0
        %678 = vmatpush1.bf16.msra.mxu0 0
        %679 = vmatprep.subr.bf16.mxu0 0
        %680 = vmatpush1.bf16.msra.mxu0 0
        %681 = vmatprep.subr.bf16.mxu0 0
        %682 = vmatpush1.bf16.msra.mxu0 0
        %683 = vmatprep.subr.bf16.mxu0 0
        %684 = vmatpush1.bf16.msra.mxu0 0
        %685 = vmatprep.subr.bf16.mxu0 0
        %686 = vmatpush1.bf16.msra.mxu0 0
        %687 = vmatprep.subr.bf16.mxu0 0
        %688 = vmatpush1.bf16.msra.mxu0 0
        %689 = vmatprep.mubr.bf16.mxu0 0
        %690 = vmatmul.mubr.bf16.gmra.mrb[0].mxu0 %v349
        %v691 = vpop.f32.mrb[0].mxu0
        %v692 = vadd.f32 %v643, %v691
        %v693 = vpop.f32.mrb[0].mxu0
        %v694 = vpop.f32.mrb[0].mxu0
        %v695 = vpop.f32.mrb[0].mxu0
        %696 = vdwg.mxu0
        %s697 = scalar_lea.vmem %s1, 64
        %v698 = vld [vmem:[%s697] sm:$0xf]
        %v699 = vld [vmem:[%s697 + $0x4] sm:$0xf]
        %v700 = vld [vmem:[%s697 + $0x8] sm:$0xf]
        %v701 = vld [vmem:[%s697 + $0xc] sm:$0xf]
        %s702 = scalar_lea.vmem %s2, 4
        %v703 = vld [vmem:[%s702] sm:$0x1]
        %v705 = vlaneseq
        %v706 = vshrl.u32 %v705, 7
        %v707 = vsub.s32 0, %v706
        %v708 = vrot.slane %v703, %v707
        %v714 = vunpack.c.l.b16 %v698
        %v715 = vunpack.c.l.b16 %v699
        %v716 = vunpack.c.l.b16 %v700
        %v717 = vunpack.c.l.b16 %v701
        %v718 = vpack.c.b16 %v715, %v714
        %v719 = vpack.c.b16 %v717, %v716
        %722 = vmatprep.subr.bf16.mxu0 0
        %723 = vmatpush1.bf16.msra.mxu0 %v718
        %724 = vmatprep.subr.bf16.mxu0 0
        %725 = vmatpush1.bf16.msra.mxu0 %v719
        %726 = vmatprep.subr.bf16.mxu0 0
        %727 = vmatpush1.bf16.msra.mxu0 0
        %728 = vmatprep.subr.bf16.mxu0 0
        %729 = vmatpush1.bf16.msra.mxu0 0
        %730 = vmatprep.subr.bf16.mxu0 0
        %731 = vmatpush1.bf16.msra.mxu0 0
        %732 = vmatprep.subr.bf16.mxu0 0
        %733 = vmatpush1.bf16.msra.mxu0 0
        %734 = vmatprep.subr.bf16.mxu0 0
        %735 = vmatpush1.bf16.msra.mxu0 0
        %736 = vmatprep.subr.bf16.mxu0 0
        %737 = vmatpush1.bf16.msra.mxu0 0
        %738 = vmatprep.subr.bf16.mxu0 0
        %739 = vmatpush1.bf16.msra.mxu0 0
        %740 = vmatprep.subr.bf16.mxu0 0
        %741 = vmatpush1.bf16.msra.mxu0 0
        %742 = vmatprep.subr.bf16.mxu0 0
        %743 = vmatpush1.bf16.msra.mxu0 0
        %744 = vmatprep.subr.bf16.mxu0 0
        %745 = vmatpush1.bf16.msra.mxu0 0
        %746 = vmatprep.subr.bf16.mxu0 0
        %747 = vmatpush1.bf16.msra.mxu0 0
        %748 = vmatprep.subr.bf16.mxu0 0
        %749 = vmatpush1.bf16.msra.mxu0 0
        %750 = vmatprep.subr.bf16.mxu0 0
        %751 = vmatpush1.bf16.msra.mxu0 0
        %752 = vmatprep.subr.bf16.mxu0 0
        %753 = vmatpush1.bf16.msra.mxu0 0
        %754 = vmatprep.mubr.bf16.mxu0 0
        %755 = vmatmul.mubr.bf16.gmra.mrb[0].mxu0 %v349
        %v756 = vpop.f32.mrb[0].mxu0
        %v757 = vadd.f32 %v708, %v756
        %v758 = vpop.f32.mrb[0].mxu0
        %v759 = vpop.f32.mrb[0].mxu0
        %v760 = vpop.f32.mrb[0].mxu0
        %761 = vdwg.mxu0
        %s762 = scalar_lea.vmem %s1, 80
        %v763 = vld [vmem:[%s762] sm:$0xf]
        %v764 = vld [vmem:[%s762 + $0x4] sm:$0xf]
        %v765 = vld [vmem:[%s762 + $0x8] sm:$0xf]
        %v766 = vld [vmem:[%s762 + $0xc] sm:$0xf]
        %s767 = scalar_lea.vmem %s2, 5
        %v768 = vld [vmem:[%s767] sm:$0x1]
        %v770 = vlaneseq
        %v771 = vshrl.u32 %v770, 7
        %v772 = vsub.s32 0, %v771
        %v773 = vrot.slane %v768, %v772
        %v779 = vunpack.c.l.b16 %v763
        %v780 = vunpack.c.l.b16 %v764
        %v781 = vunpack.c.l.b16 %v765
        %v782 = vunpack.c.l.b16 %v766
        %v783 = vpack.c.b16 %v780, %v779
        %v784 = vpack.c.b16 %v782, %v781
        %787 = vmatprep.subr.bf16.mxu0 0
        %788 = vmatpush1.bf16.msra.mxu0 %v783
        %789 = vmatprep.subr.bf16.mxu0 0
        %790 = vmatpush1.bf16.msra.mxu0 %v784
        %791 = vmatprep.subr.bf16.mxu0 0
        %792 = vmatpush1.bf16.msra.mxu0 0
        %793 = vmatprep.subr.bf16.mxu0 0
        %794 = vmatpush1.bf16.msra.mxu0 0
        %795 = vmatprep.subr.bf16.mxu0 0
        %796 = vmatpush1.bf16.msra.mxu0 0
        %797 = vmatprep.subr.bf16.mxu0 0
        %798 = vmatpush1.bf16.msra.mxu0 0
        %799 = vmatprep.subr.bf16.mxu0 0
        %800 = vmatpush1.bf16.msra.mxu0 0
        %801 = vmatprep.subr.bf16.mxu0 0
        %802 = vmatpush1.bf16.msra.mxu0 0
        %803 = vmatprep.subr.bf16.mxu0 0
        %804 = vmatpush1.bf16.msra.mxu0 0
        %805 = vmatprep.subr.bf16.mxu0 0
        %806 = vmatpush1.bf16.msra.mxu0 0
        %807 = vmatprep.subr.bf16.mxu0 0
        %808 = vmatpush1.bf16.msra.mxu0 0
        %809 = vmatprep.subr.bf16.mxu0 0
        %810 = vmatpush1.bf16.msra.mxu0 0
        %811 = vmatprep.subr.bf16.mxu0 0
        %812 = vmatpush1.bf16.msra.mxu0 0
        %813 = vmatprep.subr.bf16.mxu0 0
        %814 = vmatpush1.bf16.msra.mxu0 0
        %815 = vmatprep.subr.bf16.mxu0 0
        %816 = vmatpush1.bf16.msra.mxu0 0
        %817 = vmatprep.subr.bf16.mxu0 0
        %818 = vmatpush1.bf16.msra.mxu0 0
        %819 = vmatprep.mubr.bf16.mxu0 0
        %820 = vmatmul.mubr.bf16.gmra.mrb[0].mxu0 %v349
        %v821 = vpop.f32.mrb[0].mxu0
        %v822 = vadd.f32 %v773, %v821
        %v823 = vpop.f32.mrb[0].mxu0
        %v824 = vpop.f32.mrb[0].mxu0
        %v825 = vpop.f32.mrb[0].mxu0
        %826 = vdwg.mxu0
        %v827 = vpack.c.bf16 %v692, %v692
        %v828 = vpack.c.bf16 %v757, %v757
        %v830 = vsel %vm523, %v827, 0
        %v833 = vsel %vm523, %v828, 0
        %835 = vmatprep.subr.bf16.mxu0 0
        %836 = vmatpush1.bf16.xpose.msra.mxu0 %v833
        %837 = vmatprep.subr.bf16.mxu0 0
        %838 = vmatpush1.bf16.xpose.msra.mxu0 0
        %839 = vmatprep.subr.bf16.mxu0 0
        %840 = vmatpush1.bf16.xpose.msra.mxu0 0
        %841 = vmatprep.subr.bf16.mxu0 0
        %842 = vmatpush1.bf16.xpose.msra.mxu0 0
        %843 = vmatprep.subr.bf16.mxu0 0
        %844 = vmatpush1.bf16.xpose.msra.mxu0 0
        %845 = vmatprep.subr.bf16.mxu0 0
        %846 = vmatpush1.bf16.xpose.msra.mxu0 0
        %847 = vmatprep.subr.bf16.mxu0 0
        %848 = vmatpush1.bf16.xpose.msra.mxu0 0
        %849 = vmatprep.subr.bf16.mxu0 0
        %850 = vmatpush1.bf16.xpose.msra.mxu0 0
        %851 = vmatprep.subr.bf16.mxu0 0
        %852 = vmatpush1.bf16.xpose.msra.mxu0 0
        %853 = vmatprep.subr.bf16.mxu0 0
        %854 = vmatpush1.bf16.xpose.msra.mxu0 0
        %855 = vmatprep.subr.bf16.mxu0 0
        %856 = vmatpush1.bf16.xpose.msra.mxu0 0
        %857 = vmatprep.subr.bf16.mxu0 0
        %858 = vmatpush1.bf16.xpose.msra.mxu0 0
        %859 = vmatprep.subr.bf16.mxu0 0
        %860 = vmatpush1.bf16.xpose.msra.mxu0 0
        %861 = vmatprep.subr.bf16.mxu0 0
        %862 = vmatpush1.bf16.xpose.msra.mxu0 0
        %863 = vmatprep.subr.bf16.mxu0 0
        %864 = vmatpush1.bf16.xpose.msra.mxu0 0
        %865 = vmatprep.subr.bf16.mxu0 0
        %866 = vmatpush1.bf16.xpose.msra.mxu0 0
        %867 = vmatprep.mubr.bf16.mxu0 0
        %868 = vmatmul.mubr.bf16.gmra.mrb[0].mxu0 %v830
        %v869 = vpop.f32.mrb[0].mxu0
        %v870 = vadd.f32 %v324, %v869
        %v871 = vpop.f32.mrb[0].mxu0
        %v872 = vpop.f32.mrb[0].mxu0
        %v873 = vpop.f32.mrb[0].mxu0
        %874 = vdwg.mxu0
        %v875 = vsel %vm523, %v870, -inf
        %876 = vmax.xlane.f32.xlu0 %v875
        %v877 = vpop.xlane.xlu0 %876
        %v878 = vsub.f32 %v870, %v877
        %v879 = vmul.f32 %v878, 1.442695
        %v880 = vpow.pop %v879
        %v881 = vsel %vm523, %v880, 0.0
        %882 = vadd.xlane.f32.xlu0 %v881
        %v883 = vpop.xlane.xlu0 %882
        %v884 = vrcp.pop %v883
        %v885 = vmul.f32 %v880, %v884
        %v886 = vpack.c.bf16 %v885, %v885
        %v887 = vpack.c.bf16 %v822, %v822
        %v889 = vsel %vm523, %v886, 0
        %v892 = vsel %vm586, %v887, 0
        %894 = vmatprep.subr.bf16.mxu0 0
        %895 = vmatpush1.bf16.msra.mxu0 %v892
        %896 = vmatprep.subr.bf16.mxu0 0
        %897 = vmatpush1.bf16.msra.mxu0 0
        %898 = vmatprep.subr.bf16.mxu0 0
        %899 = vmatpush1.bf16.msra.mxu0 0
        %900 = vmatprep.subr.bf16.mxu0 0
        %901 = vmatpush1.bf16.msra.mxu0 0
        %902 = vmatprep.subr.bf16.mxu0 0
        %903 = vmatpush1.bf16.msra.mxu0 0
        %904 = vmatprep.subr.bf16.mxu0 0
        %905 = vmatpush1.bf16.msra.mxu0 0
        %906 = vmatprep.subr.bf16.mxu0 0
        %907 = vmatpush1.bf16.msra.mxu0 0
        %908 = vmatprep.subr.bf16.mxu0 0
        %909 = vmatpush1.bf16.msra.mxu0 0
        %910 = vmatprep.subr.bf16.mxu0 0
        %911 = vmatpush1.bf16.msra.mxu0 0
        %912 = vmatprep.subr.bf16.mxu0 0
        %913 = vmatpush1.bf16.msra.mxu0 0
        %914 = vmatprep.subr.bf16.mxu0 0
        %915 = vmatpush1.bf16.msra.mxu0 0
        %916 = vmatprep.subr.bf16.mxu0 0
        %917 = vmatpush1.bf16.msra.mxu0 0
        %918 = vmatprep.subr.bf16.mxu0 0
        %919 = vmatpush1.bf16.msra.mxu0 0
        %920 = vmatprep.subr.bf16.mxu0 0
        %921 = vmatpush1.bf16.msra.mxu0 0
        %922 = vmatprep.subr.bf16.mxu0 0
        %923 = vmatpush1.bf16.msra.mxu0 0
        %924 = vmatprep.subr.bf16.mxu0 0
        %925 = vmatpush1.bf16.msra.mxu0 0
        %926 = vmatprep.mubr.bf16.mxu0 0
        %927 = vmatmul.mubr.bf16.gmra.mrb[0].mxu0 %v889
        %v928 = vpop.f32.mrb[0].mxu0
        %v929 = vadd.f32 0.0, %v928
        %v930 = vpop.f32.mrb[0].mxu0
        %v931 = vpop.f32.mrb[0].mxu0
        %v932 = vpop.f32.mrb[0].mxu0
        %933 = vdwg.mxu0
        %v934 = vpack.c.bf16 %v929, %v929
        %s935 = scalar_lea.vmem %s3, 4
        %v936 = vld [vmem:[%s935] sm:$0xf]
        %v938 = vsel %vm523, %v934, 0
        %v941 = vsel %vm586, %v936, 0
        %943 = vmatprep.subr.bf16.mxu0 0
        %944 = vmatpush1.bf16.msra.mxu0 %v941
        %945 = vmatprep.subr.bf16.mxu0 0
        %946 = vmatpush1.bf16.msra.mxu0 0
        %947 = vmatprep.subr.bf16.mxu0 0
        %948 = vmatpush1.bf16.msra.mxu0 0
        %949 = vmatprep.subr.bf16.mxu0 0
        %950 = vmatpush1.bf16.msra.mxu0 0
        %951 = vmatprep.subr.bf16.mxu0 0
        %952 = vmatpush1.bf16.msra.mxu0 0
        %953 = vmatprep.subr.bf16.mxu0 0
        %954 = vmatpush1.bf16.msra.mxu0 0
        %955 = vmatprep.subr.bf16.mxu0 0
        %956 = vmatpush1.bf16.msra.mxu0 0
        %957 = vmatprep.subr.bf16.mxu0 0
        %958 = vmatpush1.bf16.msra.mxu0 0
        %959 = vmatprep.subr.bf16.mxu0 0
        %960 = vmatpush1.bf16.msra.mxu0 0
        %961 = vmatprep.subr.bf16.mxu0 0
        %962 = vmatpush1.bf16.msra.mxu0 0
        %963 = vmatprep.subr.bf16.mxu0 0
        %964 = vmatpush1.bf16.msra.mxu0 0
        %965 = vmatprep.subr.bf16.mxu0 0
        %966 = vmatpush1.bf16.msra.mxu0 0
        %967 = vmatprep.subr.bf16.mxu0 0
        %968 = vmatpush1.bf16.msra.mxu0 0
        %969 = vmatprep.subr.bf16.mxu0 0
        %970 = vmatpush1.bf16.msra.mxu0 0
        %971 = vmatprep.subr.bf16.mxu0 0
        %972 = vmatpush1.bf16.msra.mxu0 0
        %973 = vmatprep.subr.bf16.mxu0 0
        %974 = vmatpush1.bf16.msra.mxu0 0
        %975 = vmatprep.mubr.bf16.mxu0 0
        %976 = vmatmul.mubr.bf16.gmra.mrb[0].mxu0 %v938
        %v977 = vpop.f32.mrb[0].mxu0
        %v978 = vadd.f32 0.0, %v977
        %v979 = vpop.f32.mrb[0].mxu0
        %v980 = vpop.f32.mrb[0].mxu0
        %v981 = vpop.f32.mrb[0].mxu0
        %982 = vdwg.mxu0
        %v984 = vsel %vm523, %v630, 0
        %v987 = vsel %vm586, %v631, 0
        %989 = vmatprep.subr.bf16.mxu0 0
        %990 = vmatpush1.bf16.msra.mxu0 %v987
        %991 = vmatprep.subr.bf16.mxu0 0
        %992 = vmatpush1.bf16.msra.mxu0 0
        %993 = vmatprep.subr.bf16.mxu0 0
        %994 = vmatpush1.bf16.msra.mxu0 0
        %995 = vmatprep.subr.bf16.mxu0 0
        %996 = vmatpush1.bf16.msra.mxu0 0
        %997 = vmatprep.subr.bf16.mxu0 0
        %998 = vmatpush1.bf16.msra.mxu0 0
        %999 = vmatprep.subr.bf16.mxu0 0
        %1000 = vmatpush1.bf16.msra.mxu0 0
        %1001 = vmatprep.subr.bf16.mxu0 0
        %1002 = vmatpush1.bf16.msra.mxu0 0
        %1003 = vmatprep.subr.bf16.mxu0 0
        %1004 = vmatpush1.bf16.msra.mxu0 0
        %1005 = vmatprep.subr.bf16.mxu0 0
        %1006 = vmatpush1.bf16.msra.mxu0 0
        %1007 = vmatprep.subr.bf16.mxu0 0
        %1008 = vmatpush1.bf16.msra.mxu0 0
        %1009 = vmatprep.subr.bf16.mxu0 0
        %1010 = vmatpush1.bf16.msra.mxu0 0
        %1011 = vmatprep.subr.bf16.mxu0 0
        %1012 = vmatpush1.bf16.msra.mxu0 0
        %1013 = vmatprep.subr.bf16.mxu0 0
        %1014 = vmatpush1.bf16.msra.mxu0 0
        %1015 = vmatprep.subr.bf16.mxu0 0
        %1016 = vmatpush1.bf16.msra.mxu0 0
        %1017 = vmatprep.subr.bf16.mxu0 0
        %1018 = vmatpush1.bf16.msra.mxu0 0
        %1019 = vmatprep.subr.bf16.mxu0 0
        %1020 = vmatpush1.bf16.msra.mxu0 0
        %1021 = vmatprep.mubr.bf16.mxu0 0
        %1022 = vmatmul.mubr.bf16.gmra.mrb[0].mxu0 %v984
        %v1023 = vpop.f32.mrb[0].mxu0
        %v1024 = vadd.f32 %v978, %v1023
        %v1025 = vpop.f32.mrb[0].mxu0
        %v1026 = vpop.f32.mrb[0].mxu0
        %v1027 = vpop.f32.mrb[0].mxu0
        %1028 = vdwg.mxu0
        %s1029 = scalar_lea.vmem %s1, 96
        %v1030 = vld [vmem:[%s1029] sm:$0xf]
        %v1031 = vld [vmem:[%s1029 + $0x4] sm:$0xf]
        %v1032 = vld [vmem:[%s1029 + $0x8] sm:$0xf]
        %v1033 = vld [vmem:[%s1029 + $0xc] sm:$0xf]
        %s1034 = scalar_lea.vmem %s2, 6
        %v1035 = vld [vmem:[%s1034] sm:$0x1]
        %v1037 = vlaneseq
        %v1038 = vshrl.u32 %v1037, 7
        %v1039 = vsub.s32 0, %v1038
        %v1040 = vrot.slane %v1035, %v1039
        %v1046 = vunpack.c.l.b16 %v1030
        %v1047 = vunpack.c.l.b16 %v1031
        %v1048 = vunpack.c.l.b16 %v1032
        %v1049 = vunpack.c.l.b16 %v1033
        %v1050 = vpack.c.b16 %v1047, %v1046
        %v1051 = vpack.c.b16 %v1049, %v1048
        %1054 = vmatprep.subr.bf16.mxu0 0
        %1055 = vmatpush1.bf16.msra.mxu0 %v1050
        %1056 = vmatprep.subr.bf16.mxu0 0
        %1057 = vmatpush1.bf16.msra.mxu0 %v1051
        %1058 = vmatprep.subr.bf16.mxu0 0
        %1059 = vmatpush1.bf16.msra.mxu0 0
        %1060 = vmatprep.subr.bf16.mxu0 0
        %1061 = vmatpush1.bf16.msra.mxu0 0
        %1062 = vmatprep.subr.bf16.mxu0 0
        %1063 = vmatpush1.bf16.msra.mxu0 0
        %1064 = vmatprep.subr.bf16.mxu0 0
        %1065 = vmatpush1.bf16.msra.mxu0 0
        %1066 = vmatprep.subr.bf16.mxu0 0
        %1067 = vmatpush1.bf16.msra.mxu0 0
        %1068 = vmatprep.subr.bf16.mxu0 0
        %1069 = vmatpush1.bf16.msra.mxu0 0
        %1070 = vmatprep.subr.bf16.mxu0 0
        %1071 = vmatpush1.bf16.msra.mxu0 0
        %1072 = vmatprep.subr.bf16.mxu0 0
        %1073 = vmatpush1.bf16.msra.mxu0 0
        %1074 = vmatprep.subr.bf16.mxu0 0
        %1075 = vmatpush1.bf16.msra.mxu0 0
        %1076 = vmatprep.subr.bf16.mxu0 0
        %1077 = vmatpush1.bf16.msra.mxu0 0
        %1078 = vmatprep.subr.bf16.mxu0 0
        %1079 = vmatpush1.bf16.msra.mxu0 0
        %1080 = vmatprep.subr.bf16.mxu0 0
        %1081 = vmatpush1.bf16.msra.mxu0 0
        %1082 = vmatprep.subr.bf16.mxu0 0
        %1083 = vmatpush1.bf16.msra.mxu0 0
        %1084 = vmatprep.subr.bf16.mxu0 0
        %1085 = vmatpush1.bf16.msra.mxu0 0
        %1086 = vmatprep.mubr.bf16.mxu0 0
        %1087 = vmatmul.mubr.bf16.gmra.mrb[0].mxu0 %v349
        %v1088 = vpop.f32.mrb[0].mxu0
        %v1089 = vadd.f32 %v1040, %v1088
        %v1090 = vpop.f32.mrb[0].mxu0
        %v1091 = vpop.f32.mrb[0].mxu0
        %v1092 = vpop.f32.mrb[0].mxu0
        %1093 = vdwg.mxu0
        %s1094 = scalar_lea.vmem %s1, 112
        %v1095 = vld [vmem:[%s1094] sm:$0xf]
        %v1096 = vld [vmem:[%s1094 + $0x4] sm:$0xf]
        %v1097 = vld [vmem:[%s1094 + $0x8] sm:$0xf]
        %v1098 = vld [vmem:[%s1094 + $0xc] sm:$0xf]
        %s1099 = scalar_lea.vmem %s2, 7
        %v1100 = vld [vmem:[%s1099] sm:$0x1]
        %v1102 = vlaneseq
        %v1103 = vshrl.u32 %v1102, 7
        %v1104 = vsub.s32 0, %v1103
        %v1105 = vrot.slane %v1100, %v1104
        %v1111 = vunpack.c.l.b16 %v1095
        %v1112 = vunpack.c.l.b16 %v1096
        %v1113 = vunpack.c.l.b16 %v1097
        %v1114 = vunpack.c.l.b16 %v1098
        %v1115 = vpack.c.b16 %v1112, %v1111
        %v1116 = vpack.c.b16 %v1114, %v1113
        %1119 = vmatprep.subr.bf16.mxu0 0
        %1120 = vmatpush1.bf16.msra.mxu0 %v1115
        %1121 = vmatprep.subr.bf16.mxu0 0
        %1122 = vmatpush1.bf16.msra.mxu0 %v1116
        %1123 = vmatprep.subr.bf16.mxu0 0
        %1124 = vmatpush1.bf16.msra.mxu0 0
        %1125 = vmatprep.subr.bf16.mxu0 0
        %1126 = vmatpush1.bf16.msra.mxu0 0
        %1127 = vmatprep.subr.bf16.mxu0 0
        %1128 = vmatpush1.bf16.msra.mxu0 0
        %1129 = vmatprep.subr.bf16.mxu0 0
        %1130 = vmatpush1.bf16.msra.mxu0 0
        %1131 = vmatprep.subr.bf16.mxu0 0
        %1132 = vmatpush1.bf16.msra.mxu0 0
        %1133 = vmatprep.subr.bf16.mxu0 0
        %1134 = vmatpush1.bf16.msra.mxu0 0
        %1135 = vmatprep.subr.bf16.mxu0 0
        %1136 = vmatpush1.bf16.msra.mxu0 0
        %1137 = vmatprep.subr.bf16.mxu0 0
        %1138 = vmatpush1.bf16.msra.mxu0 0
        %1139 = vmatprep.subr.bf16.mxu0 0
        %1140 = vmatpush1.bf16.msra.mxu0 0
        %1141 = vmatprep.subr.bf16.mxu0 0
        %1142 = vmatpush1.bf16.msra.mxu0 0
        %1143 = vmatprep.subr.bf16.mxu0 0
        %1144 = vmatpush1.bf16.msra.mxu0 0
        %1145 = vmatprep.subr.bf16.mxu0 0
        %1146 = vmatpush1.bf16.msra.mxu0 0
        %1147 = vmatprep.subr.bf16.mxu0 0
        %1148 = vmatpush1.bf16.msra.mxu0 0
        %1149 = vmatprep.subr.bf16.mxu0 0
        %1150 = vmatpush1.bf16.msra.mxu0 0
        %1151 = vmatprep.mubr.bf16.mxu0 0
        %1152 = vmatmul.mubr.bf16.gmra.mrb[0].mxu0 %v349
        %v1153 = vpop.f32.mrb[0].mxu0
        %v1154 = vadd.f32 %v1105, %v1153
        %v1155 = vpop.f32.mrb[0].mxu0
        %v1156 = vpop.f32.mrb[0].mxu0
        %v1157 = vpop.f32.mrb[0].mxu0
        %1158 = vdwg.mxu0
        %s1159 = scalar_lea.vmem %s1, 128
        %v1160 = vld [vmem:[%s1159] sm:$0xf]
        %v1161 = vld [vmem:[%s1159 + $0x4] sm:$0xf]
        %v1162 = vld [vmem:[%s1159 + $0x8] sm:$0xf]
        %v1163 = vld [vmem:[%s1159 + $0xc] sm:$0xf]
        %s1164 = scalar_lea.vmem %s2, 8
        %v1165 = vld [vmem:[%s1164] sm:$0x1]
        %v1167 = vlaneseq
        %v1168 = vshrl.u32 %v1167, 7
        %v1169 = vsub.s32 0, %v1168
        %v1170 = vrot.slane %v1165, %v1169
        %v1176 = vunpack.c.l.b16 %v1160
        %v1177 = vunpack.c.l.b16 %v1161
        %v1178 = vunpack.c.l.b16 %v1162
        %v1179 = vunpack.c.l.b16 %v1163
        %v1180 = vpack.c.b16 %v1177, %v1176
        %v1181 = vpack.c.b16 %v1179, %v1178
        %1184 = vmatprep.subr.bf16.mxu0 0
        %1185 = vmatpush1.bf16.msra.mxu0 %v1180
        %1186 = vmatprep.subr.bf16.mxu0 0
        %1187 = vmatpush1.bf16.msra.mxu0 %v1181
        %1188 = vmatprep.subr.bf16.mxu0 0
        %1189 = vmatpush1.bf16.msra.mxu0 0
        %1190 = vmatprep.subr.bf16.mxu0 0
        %1191 = vmatpush1.bf16.msra.mxu0 0
        %1192 = vmatprep.subr.bf16.mxu0 0
        %1193 = vmatpush1.bf16.msra.mxu0 0
        %1194 = vmatprep.subr.bf16.mxu0 0
        %1195 = vmatpush1.bf16.msra.mxu0 0
        %1196 = vmatprep.subr.bf16.mxu0 0
        %1197 = vmatpush1.bf16.msra.mxu0 0
        %1198 = vmatprep.subr.bf16.mxu0 0
        %1199 = vmatpush1.bf16.msra.mxu0 0
        %1200 = vmatprep.subr.bf16.mxu0 0
        %1201 = vmatpush1.bf16.msra.mxu0 0
        %1202 = vmatprep.subr.bf16.mxu0 0
        %1203 = vmatpush1.bf16.msra.mxu0 0
        %1204 = vmatprep.subr.bf16.mxu0 0
        %1205 = vmatpush1.bf16.msra.mxu0 0
        %1206 = vmatprep.subr.bf16.mxu0 0
        %1207 = vmatpush1.bf16.msra.mxu0 0
        %1208 = vmatprep.subr.bf16.mxu0 0
        %1209 = vmatpush1.bf16.msra.mxu0 0
        %1210 = vmatprep.subr.bf16.mxu0 0
        %1211 = vmatpush1.bf16.msra.mxu0 0
        %1212 = vmatprep.subr.bf16.mxu0 0
        %1213 = vmatpush1.bf16.msra.mxu0 0
        %1214 = vmatprep.subr.bf16.mxu0 0
        %1215 = vmatpush1.bf16.msra.mxu0 0
        %1216 = vmatprep.mubr.bf16.mxu0 0
        %1217 = vmatmul.mubr.bf16.gmra.mrb[0].mxu0 %v349
        %v1218 = vpop.f32.mrb[0].mxu0
        %v1219 = vadd.f32 %v1170, %v1218
        %v1220 = vpop.f32.mrb[0].mxu0
        %v1221 = vpop.f32.mrb[0].mxu0
        %v1222 = vpop.f32.mrb[0].mxu0
        %1223 = vdwg.mxu0
        %v1224 = vpack.c.bf16 %v1089, %v1089
        %v1225 = vpack.c.bf16 %v1154, %v1154
        %v1227 = vsel %vm523, %v1224, 0
        %v1230 = vsel %vm523, %v1225, 0
        %1232 = vmatprep.subr.bf16.mxu0 0
        %1233 = vmatpush1.bf16.xpose.msra.mxu0 %v1230
        %1234 = vmatprep.subr.bf16.mxu0 0
        %1235 = vmatpush1.bf16.xpose.msra.mxu0 0
        %1236 = vmatprep.subr.bf16.mxu0 0
        %1237 = vmatpush1.bf16.xpose.msra.mxu0 0
        %1238 = vmatprep.subr.bf16.mxu0 0
        %1239 = vmatpush1.bf16.xpose.msra.mxu0 0
        %1240 = vmatprep.subr.bf16.mxu0 0
        %1241 = vmatpush1.bf16.xpose.msra.mxu0 0
        %1242 = vmatprep.subr.bf16.mxu0 0
        %1243 = vmatpush1.bf16.xpose.msra.mxu0 0
        %1244 = vmatprep.subr.bf16.mxu0 0
        %1245 = vmatpush1.bf16.xpose.msra.mxu0 0
        %1246 = vmatprep.subr.bf16.mxu0 0
        %1247 = vmatpush1.bf16.xpose.msra.mxu0 0
        %1248 = vmatprep.subr.bf16.mxu0 0
        %1249 = vmatpush1.bf16.xpose.msra.mxu0 0
        %1250 = vmatprep.subr.bf16.mxu0 0
        %1251 = vmatpush1.bf16.xpose.msra.mxu0 0
        %1252 = vmatprep.subr.bf16.mxu0 0
        %1253 = vmatpush1.bf16.xpose.msra.mxu0 0
        %1254 = vmatprep.subr.bf16.mxu0 0
        %1255 = vmatpush1.bf16.xpose.msra.mxu0 0
        %1256 = vmatprep.subr.bf16.mxu0 0
        %1257 = vmatpush1.bf16.xpose.msra.mxu0 0
        %1258 = vmatprep.subr.bf16.mxu0 0
        %1259 = vmatpush1.bf16.xpose.msra.mxu0 0
        %1260 = vmatprep.subr.bf16.mxu0 0
        %1261 = vmatpush1.bf16.xpose.msra.mxu0 0
        %1262 = vmatprep.subr.bf16.mxu0 0
        %1263 = vmatpush1.bf16.xpose.msra.mxu0 0
        %1264 = vmatprep.mubr.bf16.mxu0 0
        %1265 = vmatmul.mubr.bf16.gmra.mrb[0].mxu0 %v1227
        %v1266 = vpop.f32.mrb[0].mxu0
        %v1267 = vadd.f32 %v324, %v1266
        %v1268 = vpop.f32.mrb[0].mxu0
        %v1269 = vpop.f32.mrb[0].mxu0
        %v1270 = vpop.f32.mrb[0].mxu0
        %1271 = vdwg.mxu0
        %v1272 = vsel %vm523, %v1267, -inf
        %1273 = vmax.xlane.f32.xlu0 %v1272
        %v1274 = vpop.xlane.xlu0 %1273
        %v1275 = vsub.f32 %v1267, %v1274
        %v1276 = vmul.f32 %v1275, 1.442695
        %v1277 = vpow.pop %v1276
        %v1278 = vsel %vm523, %v1277, 0.0
        %1279 = vadd.xlane.f32.xlu0 %v1278
        %v1280 = vpop.xlane.xlu0 %1279
        %v1281 = vrcp.pop %v1280
        %v1282 = vmul.f32 %v1277, %v1281
        %v1283 = vpack.c.bf16 %v1282, %v1282
        %v1284 = vpack.c.bf16 %v1219, %v1219
        %v1286 = vsel %vm523, %v1283, 0
        %v1289 = vsel %vm586, %v1284, 0
        %1291 = vmatprep.subr.bf16.mxu0 0
        %1292 = vmatpush1.bf16.msra.mxu0 %v1289
        %1293 = vmatprep.subr.bf16.mxu0 0
        %1294 = vmatpush1.bf16.msra.mxu0 0
        %1295 = vmatprep.subr.bf16.mxu0 0
        %1296 = vmatpush1.bf16.msra.mxu0 0
        %1297 = vmatprep.subr.bf16.mxu0 0
        %1298 = vmatpush1.bf16.msra.mxu0 0
        %1299 = vmatprep.subr.bf16.mxu0 0
        %1300 = vmatpush1.bf16.msra.mxu0 0
        %1301 = vmatprep.subr.bf16.mxu0 0
        %1302 = vmatpush1.bf16.msra.mxu0 0
        %1303 = vmatprep.subr.bf16.mxu0 0
        %1304 = vmatpush1.bf16.msra.mxu0 0
        %1305 = vmatprep.subr.bf16.mxu0 0
        %1306 = vmatpush1.bf16.msra.mxu0 0
        %1307 = vmatprep.subr.bf16.mxu0 0
        %1308 = vmatpush1.bf16.msra.mxu0 0
        %1309 = vmatprep.subr.bf16.mxu0 0
        %1310 = vmatpush1.bf16.msra.mxu0 0
        %1311 = vmatprep.subr.bf16.mxu0 0
        %1312 = vmatpush1.bf16.msra.mxu0 0
        %1313 = vmatprep.subr.bf16.mxu0 0
        %1314 = vmatpush1.bf16.msra.mxu0 0
        %1315 = vmatprep.subr.bf16.mxu0 0
        %1316 = vmatpush1.bf16.msra.mxu0 0
        %1317 = vmatprep.subr.bf16.mxu0 0
        %1318 = vmatpush1.bf16.msra.mxu0 0
        %1319 = vmatprep.subr.bf16.mxu0 0
        %1320 = vmatpush1.bf16.msra.mxu0 0
        %1321 = vmatprep.subr.bf16.mxu0 0
        %1322 = vmatpush1.bf16.msra.mxu0 0
        %1323 = vmatprep.mubr.bf16.mxu0 0
        %1324 = vmatmul.mubr.bf16.gmra.mrb[0].mxu0 %v1286
        %v1325 = vpop.f32.mrb[0].mxu0
        %v1326 = vadd.f32 0.0, %v1325
        %v1327 = vpop.f32.mrb[0].mxu0
        %v1328 = vpop.f32.mrb[0].mxu0
        %v1329 = vpop.f32.mrb[0].mxu0
        %1330 = vdwg.mxu0
        %v1331 = vpack.c.bf16 %v1326, %v1326
        %s1332 = scalar_lea.vmem %s3, 8
        %v1333 = vld [vmem:[%s1332] sm:$0xf]
        %v1335 = vsel %vm523, %v1331, 0
        %v1338 = vsel %vm586, %v1333, 0
        %1340 = vmatprep.subr.bf16.mxu0 0
        %1341 = vmatpush1.bf16.msra.mxu0 %v1338
        %1342 = vmatprep.subr.bf16.mxu0 0
        %1343 = vmatpush1.bf16.msra.mxu0 0
        %1344 = vmatprep.subr.bf16.mxu0 0
        %1345 = vmatpush1.bf16.msra.mxu0 0
        %1346 = vmatprep.subr.bf16.mxu0 0
        %1347 = vmatpush1.bf16.msra.mxu0 0
        %1348 = vmatprep.subr.bf16.mxu0 0
        %1349 = vmatpush1.bf16.msra.mxu0 0
        %1350 = vmatprep.subr.bf16.mxu0 0
        %1351 = vmatpush1.bf16.msra.mxu0 0
        %1352 = vmatprep.subr.bf16.mxu0 0
        %1353 = vmatpush1.bf16.msra.mxu0 0
        %1354 = vmatprep.subr.bf16.mxu0 0
        %1355 = vmatpush1.bf16.msra.mxu0 0
        %1356 = vmatprep.subr.bf16.mxu0 0
        %1357 = vmatpush1.bf16.msra.mxu0 0
        %1358 = vmatprep.subr.bf16.mxu0 0
        %1359 = vmatpush1.bf16.msra.mxu0 0
        %1360 = vmatprep.subr.bf16.mxu0 0
        %1361 = vmatpush1.bf16.msra.mxu0 0
        %1362 = vmatprep.subr.bf16.mxu0 0
        %1363 = vmatpush1.bf16.msra.mxu0 0
        %1364 = vmatprep.subr.bf16.mxu0 0
        %1365 = vmatpush1.bf16.msra.mxu0 0
        %1366 = vmatprep.subr.bf16.mxu0 0
        %1367 = vmatpush1.bf16.msra.mxu0 0
        %1368 = vmatprep.subr.bf16.mxu0 0
        %1369 = vmatpush1.bf16.msra.mxu0 0
        %1370 = vmatprep.subr.bf16.mxu0 0
        %1371 = vmatpush1.bf16.msra.mxu0 0
        %1372 = vmatprep.mubr.bf16.mxu0 0
        %1373 = vmatmul.mubr.bf16.gmra.mrb[0].mxu0 %v1335
        %v1374 = vpop.f32.mrb[0].mxu0
        %v1375 = vadd.f32 0.0, %v1374
        %v1376 = vpop.f32.mrb[0].mxu0
        %v1377 = vpop.f32.mrb[0].mxu0
        %v1378 = vpop.f32.mrb[0].mxu0
        %1379 = vdwg.mxu0
        %v1380 = vadd.f32 %v1024, %v1375
        %s1381 = scalar_lea.vmem %s1, 144
        %v1382 = vld [vmem:[%s1381] sm:$0xf]
        %v1383 = vld [vmem:[%s1381 + $0x4] sm:$0xf]
        %v1384 = vld [vmem:[%s1381 + $0x8] sm:$0xf]
        %v1385 = vld [vmem:[%s1381 + $0xc] sm:$0xf]
        %s1386 = scalar_lea.vmem %s2, 9
        %v1387 = vld [vmem:[%s1386] sm:$0x1]
        %v1389 = vlaneseq
        %v1390 = vshrl.u32 %v1389, 7
        %v1391 = vsub.s32 0, %v1390
        %v1392 = vrot.slane %v1387, %v1391
        %v1398 = vunpack.c.l.b16 %v1382
        %v1399 = vunpack.c.l.b16 %v1383
        %v1400 = vunpack.c.l.b16 %v1384
        %v1401 = vunpack.c.l.b16 %v1385
        %v1402 = vpack.c.b16 %v1399, %v1398
        %v1403 = vpack.c.b16 %v1401, %v1400
        %1406 = vmatprep.subr.bf16.mxu0 0
        %1407 = vmatpush1.bf16.msra.mxu0 %v1402
        %1408 = vmatprep.subr.bf16.mxu0 0
        %1409 = vmatpush1.bf16.msra.mxu0 %v1403
        %1410 = vmatprep.subr.bf16.mxu0 0
        %1411 = vmatpush1.bf16.msra.mxu0 0
        %1412 = vmatprep.subr.bf16.mxu0 0
        %1413 = vmatpush1.bf16.msra.mxu0 0
        %1414 = vmatprep.subr.bf16.mxu0 0
        %1415 = vmatpush1.bf16.msra.mxu0 0
        %1416 = vmatprep.subr.bf16.mxu0 0
        %1417 = vmatpush1.bf16.msra.mxu0 0
        %1418 = vmatprep.subr.bf16.mxu0 0
        %1419 = vmatpush1.bf16.msra.mxu0 0
        %1420 = vmatprep.subr.bf16.mxu0 0
        %1421 = vmatpush1.bf16.msra.mxu0 0
        %1422 = vmatprep.subr.bf16.mxu0 0
        %1423 = vmatpush1.bf16.msra.mxu0 0
        %1424 = vmatprep.subr.bf16.mxu0 0
        %1425 = vmatpush1.bf16.msra.mxu0 0
        %1426 = vmatprep.subr.bf16.mxu0 0
        %1427 = vmatpush1.bf16.msra.mxu0 0
        %1428 = vmatprep.subr.bf16.mxu0 0
        %1429 = vmatpush1.bf16.msra.mxu0 0
        %1430 = vmatprep.subr.bf16.mxu0 0
        %1431 = vmatpush1.bf16.msra.mxu0 0
        %1432 = vmatprep.subr.bf16.mxu0 0
        %1433 = vmatpush1.bf16.msra.mxu0 0
        %1434 = vmatprep.subr.bf16.mxu0 0
        %1435 = vmatpush1.bf16.msra.mxu0 0
        %1436 = vmatprep.subr.bf16.mxu0 0
        %1437 = vmatpush1.bf16.msra.mxu0 0
        %1438 = vmatprep.mubr.bf16.mxu0 0
        %1439 = vmatmul.mubr.bf16.gmra.mrb[0].mxu0 %v349
        %v1440 = vpop.f32.mrb[0].mxu0
        %v1441 = vadd.f32 %v1392, %v1440
        %v1442 = vpop.f32.mrb[0].mxu0
        %v1443 = vpop.f32.mrb[0].mxu0
        %v1444 = vpop.f32.mrb[0].mxu0
        %1445 = vdwg.mxu0
        %s1446 = scalar_lea.vmem %s1, 160
        %v1447 = vld [vmem:[%s1446] sm:$0xf]
        %v1448 = vld [vmem:[%s1446 + $0x4] sm:$0xf]
        %v1449 = vld [vmem:[%s1446 + $0x8] sm:$0xf]
        %v1450 = vld [vmem:[%s1446 + $0xc] sm:$0xf]
        %s1451 = scalar_lea.vmem %s2, 10
        %v1452 = vld [vmem:[%s1451] sm:$0x1]
        %v1454 = vlaneseq
        %v1455 = vshrl.u32 %v1454, 7
        %v1456 = vsub.s32 0, %v1455
        %v1457 = vrot.slane %v1452, %v1456
        %v1463 = vunpack.c.l.b16 %v1447
        %v1464 = vunpack.c.l.b16 %v1448
        %v1465 = vunpack.c.l.b16 %v1449
        %v1466 = vunpack.c.l.b16 %v1450
        %v1467 = vpack.c.b16 %v1464, %v1463
        %v1468 = vpack.c.b16 %v1466, %v1465
        %1471 = vmatprep.subr.bf16.mxu0 0
        %1472 = vmatpush1.bf16.msra.mxu0 %v1467
        %1473 = vmatprep.subr.bf16.mxu0 0
        %1474 = vmatpush1.bf16.msra.mxu0 %v1468
        %1475 = vmatprep.subr.bf16.mxu0 0
        %1476 = vmatpush1.bf16.msra.mxu0 0
        %1477 = vmatprep.subr.bf16.mxu0 0
        %1478 = vmatpush1.bf16.msra.mxu0 0
        %1479 = vmatprep.subr.bf16.mxu0 0
        %1480 = vmatpush1.bf16.msra.mxu0 0
        %1481 = vmatprep.subr.bf16.mxu0 0
        %1482 = vmatpush1.bf16.msra.mxu0 0
        %1483 = vmatprep.subr.bf16.mxu0 0
        %1484 = vmatpush1.bf16.msra.mxu0 0
        %1485 = vmatprep.subr.bf16.mxu0 0
        %1486 = vmatpush1.bf16.msra.mxu0 0
        %1487 = vmatprep.subr.bf16.mxu0 0
        %1488 = vmatpush1.bf16.msra.mxu0 0
        %1489 = vmatprep.subr.bf16.mxu0 0
        %1490 = vmatpush1.bf16.msra.mxu0 0
        %1491 = vmatprep.subr.bf16.mxu0 0
        %1492 = vmatpush1.bf16.msra.mxu0 0
        %1493 = vmatprep.subr.bf16.mxu0 0
        %1494 = vmatpush1.bf16.msra.mxu0 0
        %1495 = vmatprep.subr.bf16.mxu0 0
        %1496 = vmatpush1.bf16.msra.mxu0 0
        %1497 = vmatprep.subr.bf16.mxu0 0
        %1498 = vmatpush1.bf16.msra.mxu0 0
        %1499 = vmatprep.subr.bf16.mxu0 0
        %1500 = vmatpush1.bf16.msra.mxu0 0
        %1501 = vmatprep.subr.bf16.mxu0 0
        %1502 = vmatpush1.bf16.msra.mxu0 0
        %1503 = vmatprep.mubr.bf16.mxu0 0
        %1504 = vmatmul.mubr.bf16.gmra.mrb[0].mxu0 %v349
        %v1505 = vpop.f32.mrb[0].mxu0
        %v1506 = vadd.f32 %v1457, %v1505
        %v1507 = vpop.f32.mrb[0].mxu0
        %v1508 = vpop.f32.mrb[0].mxu0
        %v1509 = vpop.f32.mrb[0].mxu0
        %1510 = vdwg.mxu0
        %s1511 = scalar_lea.vmem %s1, 176
        %v1512 = vld [vmem:[%s1511] sm:$0xf]
        %v1513 = vld [vmem:[%s1511 + $0x4] sm:$0xf]
        %v1514 = vld [vmem:[%s1511 + $0x8] sm:$0xf]
        %v1515 = vld [vmem:[%s1511 + $0xc] sm:$0xf]
        %s1516 = scalar_lea.vmem %s2, 11
        %v1517 = vld [vmem:[%s1516] sm:$0x1]
        %v1519 = vlaneseq
        %v1520 = vshrl.u32 %v1519, 7
        %v1521 = vsub.s32 0, %v1520
        %v1522 = vrot.slane %v1517, %v1521
        %v1528 = vunpack.c.l.b16 %v1512
        %v1529 = vunpack.c.l.b16 %v1513
        %v1530 = vunpack.c.l.b16 %v1514
        %v1531 = vunpack.c.l.b16 %v1515
        %v1532 = vpack.c.b16 %v1529, %v1528
        %v1533 = vpack.c.b16 %v1531, %v1530
        %1536 = vmatprep.subr.bf16.mxu0 0
        %1537 = vmatpush1.bf16.msra.mxu0 %v1532
        %1538 = vmatprep.subr.bf16.mxu0 0
        %1539 = vmatpush1.bf16.msra.mxu0 %v1533
        %1540 = vmatprep.subr.bf16.mxu0 0
        %1541 = vmatpush1.bf16.msra.mxu0 0
        %1542 = vmatprep.subr.bf16.mxu0 0
        %1543 = vmatpush1.bf16.msra.mxu0 0
        %1544 = vmatprep.subr.bf16.mxu0 0
        %1545 = vmatpush1.bf16.msra.mxu0 0
        %1546 = vmatprep.subr.bf16.mxu0 0
        %1547 = vmatpush1.bf16.msra.mxu0 0
        %1548 = vmatprep.subr.bf16.mxu0 0
        %1549 = vmatpush1.bf16.msra.mxu0 0
        %1550 = vmatprep.subr.bf16.mxu0 0
        %1551 = vmatpush1.bf16.msra.mxu0 0
        %1552 = vmatprep.subr.bf16.mxu0 0
        %1553 = vmatpush1.bf16.msra.mxu0 0
        %1554 = vmatprep.subr.bf16.mxu0 0
        %1555 = vmatpush1.bf16.msra.mxu0 0
        %1556 = vmatprep.subr.bf16.mxu0 0
        %1557 = vmatpush1.bf16.msra.mxu0 0
        %1558 = vmatprep.subr.bf16.mxu0 0
        %1559 = vmatpush1.bf16.msra.mxu0 0
        %1560 = vmatprep.subr.bf16.mxu0 0
        %1561 = vmatpush1.bf16.msra.mxu0 0
        %1562 = vmatprep.subr.bf16.mxu0 0
        %1563 = vmatpush1.bf16.msra.mxu0 0
        %1564 = vmatprep.subr.bf16.mxu0 0
        %1565 = vmatpush1.bf16.msra.mxu0 0
        %1566 = vmatprep.subr.bf16.mxu0 0
        %1567 = vmatpush1.bf16.msra.mxu0 0
        %1568 = vmatprep.mubr.bf16.mxu0 0
        %1569 = vmatmul.mubr.bf16.gmra.mrb[0].mxu0 %v349
        %v1570 = vpop.f32.mrb[0].mxu0
        %v1571 = vadd.f32 %v1522, %v1570
        %v1572 = vpop.f32.mrb[0].mxu0
        %v1573 = vpop.f32.mrb[0].mxu0
        %v1574 = vpop.f32.mrb[0].mxu0
        %1575 = vdwg.mxu0
        %v1576 = vpack.c.bf16 %v1441, %v1441
        %v1577 = vpack.c.bf16 %v1506, %v1506
        %v1579 = vsel %vm523, %v1576, 0
        %v1582 = vsel %vm523, %v1577, 0
        %1584 = vmatprep.subr.bf16.mxu0 0
        %1585 = vmatpush1.bf16.xpose.msra.mxu0 %v1582
        %1586 = vmatprep.subr.bf16.mxu0 0
        %1587 = vmatpush1.bf16.xpose.msra.mxu0 0
        %1588 = vmatprep.subr.bf16.mxu0 0
        %1589 = vmatpush1.bf16.xpose.msra.mxu0 0
        %1590 = vmatprep.subr.bf16.mxu0 0
        %1591 = vmatpush1.bf16.xpose.msra.mxu0 0
        %1592 = vmatprep.subr.bf16.mxu0 0
        %1593 = vmatpush1.bf16.xpose.msra.mxu0 0
        %1594 = vmatprep.subr.bf16.mxu0 0
        %1595 = vmatpush1.bf16.xpose.msra.mxu0 0
        %1596 = vmatprep.subr.bf16.mxu0 0
        %1597 = vmatpush1.bf16.xpose.msra.mxu0 0
        %1598 = vmatprep.subr.bf16.mxu0 0
        %1599 = vmatpush1.bf16.xpose.msra.mxu0 0
        %1600 = vmatprep.subr.bf16.mxu0 0
        %1601 = vmatpush1.bf16.xpose.msra.mxu0 0
        %1602 = vmatprep.subr.bf16.mxu0 0
        %1603 = vmatpush1.bf16.xpose.msra.mxu0 0
        %1604 = vmatprep.subr.bf16.mxu0 0
        %1605 = vmatpush1.bf16.xpose.msra.mxu0 0
        %1606 = vmatprep.subr.bf16.mxu0 0
        %1607 = vmatpush1.bf16.xpose.msra.mxu0 0
        %1608 = vmatprep.subr.bf16.mxu0 0
        %1609 = vmatpush1.bf16.xpose.msra.mxu0 0
        %1610 = vmatprep.subr.bf16.mxu0 0
        %1611 = vmatpush1.bf16.xpose.msra.mxu0 0
        %1612 = vmatprep.subr.bf16.mxu0 0
        %1613 = vmatpush1.bf16.xpose.msra.mxu0 0
        %1614 = vmatprep.subr.bf16.mxu0 0
        %1615 = vmatpush1.bf16.xpose.msra.mxu0 0
        %1616 = vmatprep.mubr.bf16.mxu0 0
        %1617 = vmatmul.mubr.bf16.gmra.mrb[0].mxu0 %v1579
        %v1618 = vpop.f32.mrb[0].mxu0
        %v1619 = vadd.f32 %v324, %v1618
        %v1620 = vpop.f32.mrb[0].mxu0
        %v1621 = vpop.f32.mrb[0].mxu0
        %v1622 = vpop.f32.mrb[0].mxu0
        %1623 = vdwg.mxu0
        %v1624 = vsel %vm523, %v1619, -inf
        %1625 = vmax.xlane.f32.xlu0 %v1624
        %v1626 = vpop.xlane.xlu0 %1625
        %v1627 = vsub.f32 %v1619, %v1626
        %v1628 = vmul.f32 %v1627, 1.442695
        %v1629 = vpow.pop %v1628
        %v1630 = vsel %vm523, %v1629, 0.0
        %1631 = vadd.xlane.f32.xlu0 %v1630
        %v1632 = vpop.xlane.xlu0 %1631
        %v1633 = vrcp.pop %v1632
        %v1634 = vmul.f32 %v1629, %v1633
        %v1635 = vpack.c.bf16 %v1634, %v1634
        %v1636 = vpack.c.bf16 %v1571, %v1571
        %v1638 = vsel %vm523, %v1635, 0
        %v1641 = vsel %vm586, %v1636, 0
        %1643 = vmatprep.subr.bf16.mxu0 0
        %1644 = vmatpush1.bf16.msra.mxu0 %v1641
        %1645 = vmatprep.subr.bf16.mxu0 0
        %1646 = vmatpush1.bf16.msra.mxu0 0
        %1647 = vmatprep.subr.bf16.mxu0 0
        %1648 = vmatpush1.bf16.msra.mxu0 0
        %1649 = vmatprep.subr.bf16.mxu0 0
        %1650 = vmatpush1.bf16.msra.mxu0 0
        %1651 = vmatprep.subr.bf16.mxu0 0
        %1652 = vmatpush1.bf16.msra.mxu0 0
        %1653 = vmatprep.subr.bf16.mxu0 0
        %1654 = vmatpush1.bf16.msra.mxu0 0
        %1655 = vmatprep.subr.bf16.mxu0 0
        %1656 = vmatpush1.bf16.msra.mxu0 0
        %1657 = vmatprep.subr.bf16.mxu0 0
        %1658 = vmatpush1.bf16.msra.mxu0 0
        %1659 = vmatprep.subr.bf16.mxu0 0
        %1660 = vmatpush1.bf16.msra.mxu0 0
        %1661 = vmatprep.subr.bf16.mxu0 0
        %1662 = vmatpush1.bf16.msra.mxu0 0
        %1663 = vmatprep.subr.bf16.mxu0 0
        %1664 = vmatpush1.bf16.msra.mxu0 0
        %1665 = vmatprep.subr.bf16.mxu0 0
        %1666 = vmatpush1.bf16.msra.mxu0 0
        %1667 = vmatprep.subr.bf16.mxu0 0
        %1668 = vmatpush1.bf16.msra.mxu0 0
        %1669 = vmatprep.subr.bf16.mxu0 0
        %1670 = vmatpush1.bf16.msra.mxu0 0
        %1671 = vmatprep.subr.bf16.mxu0 0
        %1672 = vmatpush1.bf16.msra.mxu0 0
        %1673 = vmatprep.subr.bf16.mxu0 0
        %1674 = vmatpush1.bf16.msra.mxu0 0
        %1675 = vmatprep.mubr.bf16.mxu0 0
        %1676 = vmatmul.mubr.bf16.gmra.mrb[0].mxu0 %v1638
        %v1677 = vpop.f32.mrb[0].mxu0
        %v1678 = vadd.f32 0.0, %v1677
        %v1679 = vpop.f32.mrb[0].mxu0
        %v1680 = vpop.f32.mrb[0].mxu0
        %v1681 = vpop.f32.mrb[0].mxu0
        %1682 = vdwg.mxu0
        %v1683 = vpack.c.bf16 %v1678, %v1678
        %s1684 = scalar_lea.vmem %s3, 12
        %v1685 = vld [vmem:[%s1684] sm:$0xf]
        %v1687 = vsel %vm523, %v1683, 0
        %v1690 = vsel %vm586, %v1685, 0
        %1692 = vmatprep.subr.bf16.mxu0 0
        %1693 = vmatpush1.bf16.msra.mxu0 %v1690
        %1694 = vmatprep.subr.bf16.mxu0 0
        %1695 = vmatpush1.bf16.msra.mxu0 0
        %1696 = vmatprep.subr.bf16.mxu0 0
        %1697 = vmatpush1.bf16.msra.mxu0 0
        %1698 = vmatprep.subr.bf16.mxu0 0
        %1699 = vmatpush1.bf16.msra.mxu0 0
        %1700 = vmatprep.subr.bf16.mxu0 0
        %1701 = vmatpush1.bf16.msra.mxu0 0
        %1702 = vmatprep.subr.bf16.mxu0 0
        %1703 = vmatpush1.bf16.msra.mxu0 0
        %1704 = vmatprep.subr.bf16.mxu0 0
        %1705 = vmatpush1.bf16.msra.mxu0 0
        %1706 = vmatprep.subr.bf16.mxu0 0
        %1707 = vmatpush1.bf16.msra.mxu0 0
        %1708 = vmatprep.subr.bf16.mxu0 0
        %1709 = vmatpush1.bf16.msra.mxu0 0
        %1710 = vmatprep.subr.bf16.mxu0 0
        %1711 = vmatpush1.bf16.msra.mxu0 0
        %1712 = vmatprep.subr.bf16.mxu0 0
        %1713 = vmatpush1.bf16.msra.mxu0 0
        %1714 = vmatprep.subr.bf16.mxu0 0
        %1715 = vmatpush1.bf16.msra.mxu0 0
        %1716 = vmatprep.subr.bf16.mxu0 0
        %1717 = vmatpush1.bf16.msra.mxu0 0
        %1718 = vmatprep.subr.bf16.mxu0 0
        %1719 = vmatpush1.bf16.msra.mxu0 0
        %1720 = vmatprep.subr.bf16.mxu0 0
        %1721 = vmatpush1.bf16.msra.mxu0 0
        %1722 = vmatprep.subr.bf16.mxu0 0
        %1723 = vmatpush1.bf16.msra.mxu0 0
        %1724 = vmatprep.mubr.bf16.mxu0 0
        %1725 = vmatmul.mubr.bf16.gmra.mrb[0].mxu0 %v1687
        %v1726 = vpop.f32.mrb[0].mxu0
        %v1727 = vadd.f32 0.0, %v1726
        %v1728 = vpop.f32.mrb[0].mxu0
        %v1729 = vpop.f32.mrb[0].mxu0
        %v1730 = vpop.f32.mrb[0].mxu0
        %1731 = vdwg.mxu0
        %v1732 = vadd.f32 %v1380, %v1727
        %v1733 = vadd.f32 %v275, %v1732
        %v1735 = vlaneseq
        %v1736 = vshrl.u32 %v1735, 7
        %v1737 = vsub.s32 0, %v1736
        %v1738 = vrot.slane %v284, %v1737
        %v1740 = vadd.f32 %v1733, %v1738
        %v1741 = vsel %vm289, %v1740, 0.0
        %1742 = vadd.xlane.f32.xlu0 %v1741
        %v1743 = vpop.xlane.xlu0 %1742
        %v1744 = vmul.f32 %v1743, %v293
        %v1745 = vsub.f32 %v1740, %v1744
        %v1746 = vmul.f32 %v1745, %v1745
        %v1747 = vsel %vm289, %v1746, 0.0
        %1748 = vadd.xlane.f32.xlu0 %v1747
        %v1749 = vpop.xlane.xlu0 %1748
        %v1750 = vmul.f32 %v1749, %v293
        %v1751 = vadd.f32 %v1750, 1e-05
        %v1752 = vrsqrt.pop %v1751
        %v1753 = vmul.f32 %v1745, %v1752
        %v1755 = vlaneseq
        %v1756 = vshrl.u32 %v1755, 7
        %v1757 = vsub.s32 0, %v1756
        %v1758 = vrot.slane %v280, %v1757
        %v1760 = vmul.f32 %v1753, %v1758
        %v1762 = vlaneseq
        %v1763 = vshrl.u32 %v1762, 7
        %v1764 = vsub.s32 0, %v1763
        %v1765 = vrot.slane %v282, %v1764
        %v1767 = vadd.f32 %v1760, %v1765
        %v1768 = vpack.c.bf16 %v1767, %v1767
        %v1769 = vld [vmem:[%s4] sm:$0xf]
        %v1770 = vld [vmem:[%s4 + $0x4] sm:$0xf]
        %v1771 = vld [vmem:[%s4 + $0x8] sm:$0xf]
        %v1772 = vld [vmem:[%s4 + $0xc] sm:$0xf]
        %v1774 = vlaneseq
        %v1775 = vshrl.u32 %v1774, 7
        %v1776 = vsub.s32 0, %v1775
        %v1777 = vrot.slane %v286, %v1776
        %v1783 = vunpack.c.l.b16 %v1769
        %v1784 = vunpack.c.l.b16 %v1770
        %v1785 = vunpack.c.l.b16 %v1771
        %v1786 = vunpack.c.l.b16 %v1772
        %v1787 = vpack.c.b16 %v1784, %v1783
        %v1788 = vpack.c.b16 %v1786, %v1785
        %v1792 = vsel %vm289, %v1768, 0
        %1794 = vmatprep.subr.bf16.mxu0 0
        %1795 = vmatpush1.bf16.msra.mxu0 %v1787
        %1796 = vmatprep.subr.bf16.mxu0 0
        %1797 = vmatpush1.bf16.msra.mxu0 %v1788
        %1798 = vmatprep.subr.bf16.mxu0 0
        %1799 = vmatpush1.bf16.msra.mxu0 0
        %1800 = vmatprep.subr.bf16.mxu0 0
        %1801 = vmatpush1.bf16.msra.mxu0 0
        %1802 = vmatprep.subr.bf16.mxu0 0
        %1803 = vmatpush1.bf16.msra.mxu0 0
        %1804 = vmatprep.subr.bf16.mxu0 0
        %1805 = vmatpush1.bf16.msra.mxu0 0
        %1806 = vmatprep.subr.bf16.mxu0 0
        %1807 = vmatpush1.bf16.msra.mxu0 0
        %1808 = vmatprep.subr.bf16.mxu0 0
        %1809 = vmatpush1.bf16.msra.mxu0 0
        %1810 = vmatprep.subr.bf16.mxu0 0
        %1811 = vmatpush1.bf16.msra.mxu0 0
        %1812 = vmatprep.subr.bf16.mxu0 0
        %1813 = vmatpush1.bf16.msra.mxu0 0
        %1814 = vmatprep.subr.bf16.mxu0 0
        %1815 = vmatpush1.bf16.msra.mxu0 0
        %1816 = vmatprep.subr.bf16.mxu0 0
        %1817 = vmatpush1.bf16.msra.mxu0 0
        %1818 = vmatprep.subr.bf16.mxu0 0
        %1819 = vmatpush1.bf16.msra.mxu0 0
        %1820 = vmatprep.subr.bf16.mxu0 0
        %1821 = vmatpush1.bf16.msra.mxu0 0
        %1822 = vmatprep.subr.bf16.mxu0 0
        %1823 = vmatpush1.bf16.msra.mxu0 0
        %1824 = vmatprep.subr.bf16.mxu0 0
        %1825 = vmatpush1.bf16.msra.mxu0 0
        %1826 = vmatprep.mubr.bf16.mxu0 0
        %1827 = vmatmul.mubr.bf16.gmra.mrb[0].mxu0 %v1792
        %v1828 = vpop.f32.mrb[0].mxu0
        %v1829 = vadd.f32 %v1777, %v1828
        %v1830 = vpop.f32.mrb[0].mxu0
        %v1831 = vpop.f32.mrb[0].mxu0
        %v1832 = vpop.f32.mrb[0].mxu0
        %1833 = vdwg.mxu0
        %v1834 = vmax.f32 %v1829, 0.0
        %v1835 = vpack.c.bf16 %v1834, %v1834
        %v1836 = vld [vmem:[%s5] sm:$0xf]
        %v1837 = vld [vmem:[%s5 + $0x4] sm:$0xf]
        %v1838 = vld [vmem:[%s5 + $0x8] sm:$0xf]
        %v1839 = vld [vmem:[%s5 + $0xc] sm:$0xf]
        %v1841 = vlaneseq
        %v1842 = vshrl.u32 %v1841, 7
        %v1843 = vsub.s32 0, %v1842
        %v1844 = vrot.slane %v288, %v1843
        %v1850 = vunpack.c.l.b16 %v1836
        %v1851 = vunpack.c.l.b16 %v1837
        %v1852 = vunpack.c.l.b16 %v1838
        %v1853 = vunpack.c.l.b16 %v1839
        %v1854 = vpack.c.b16 %v1851, %v1850
        %v1855 = vpack.c.b16 %v1853, %v1852
        %v1859 = vsel %vm289, %v1835, 0
        %1861 = vmatprep.subr.bf16.mxu0 0
        %1862 = vmatpush1.bf16.msra.mxu0 %v1854
        %1863 = vmatprep.subr.bf16.mxu0 0
        %1864 = vmatpush1.bf16.msra.mxu0 %v1855
        %1865 = vmatprep.subr.bf16.mxu0 0
        %1866 = vmatpush1.bf16.msra.mxu0 0
        %1867 = vmatprep.subr.bf16.mxu0 0
        %1868 = vmatpush1.bf16.msra.mxu0 0
        %1869 = vmatprep.subr.bf16.mxu0 0
        %1870 = vmatpush1.bf16.msra.mxu0 0
        %1871 = vmatprep.subr.bf16.mxu0 0
        %1872 = vmatpush1.bf16.msra.mxu0 0
        %1873 = vmatprep.subr.bf16.mxu0 0
        %1874 = vmatpush1.bf16.msra.mxu0 0
        %1875 = vmatprep.subr.bf16.mxu0 0
        %1876 = vmatpush1.bf16.msra.mxu0 0
        %1877 = vmatprep.subr.bf16.mxu0 0
        %1878 = vmatpush1.bf16.msra.mxu0 0
        %1879 = vmatprep.subr.bf16.mxu0 0
        %1880 = vmatpush1.bf16.msra.mxu0 0
        %1881 = vmatprep.subr.bf16.mxu0 0
        %1882 = vmatpush1.bf16.msra.mxu0 0
        %1883 = vmatprep.subr.bf16.mxu0 0
        %1884 = vmatpush1.bf16.msra.mxu0 0
        %1885 = vmatprep.subr.bf16.mxu0 0
        %1886 = vmatpush1.bf16.msra.mxu0 0
        %1887 = vmatprep.subr.bf16.mxu0 0
        %1888 = vmatpush1.bf16.msra.mxu0 0
        %1889 = vmatprep.subr.bf16.mxu0 0
        %1890 = vmatpush1.bf16.msra.mxu0 0
        %1891 = vmatprep.subr.bf16.mxu0 0
        %1892 = vmatpush1.bf16.msra.mxu0 0
        %1893 = vmatprep.mubr.bf16.mxu0 0
        %1894 = vmatmul.mubr.bf16.gmra.mrb[0].mxu0 %v1859
        %v1895 = vpop.f32.mrb[0].mxu0
        %v1896 = vadd.f32 %v1844, %v1895
        %v1897 = vpop.f32.mrb[0].mxu0
        %v1898 = vpop.f32.mrb[0].mxu0
        %v1899 = vpop.f32.mrb[0].mxu0
        %1900 = vdwg.mxu0
        %v1901 = vadd.f32 %v1740, %v1896
        %1902 = vst.msk [vmem:[%s269] sm:$0xff] %vm289, %v1901
        %s1903 = sand.u32 %s181, 1
        %s1904 = scalar_lea.sflag [#allocation3], %s1903
        %s1905 = sand.u32 %s181, 1
        %s1906 = smul.addr %s1905, 8
        %s1907 = scalar_lea.vmem [#allocation2], %s1906
        // Predicated region
        $region49: #{transformer_block.1} parent=47 // pred_check
          %p1908 = pneg %p191
        $region50: #{transformer_block.1} parent=47 // pred_check_branch
          %1910 = sbr.rel (%p1908) target = $region52
        $region51: #{transformer_block.1} parent=47 // pred_region
          %s1912 = ssub.s32 128, 128
          %1913 = vsyncadd %s1904, %s1912
          %s1914 = smul.addr %s21, 128
          %s1915 = scalar_lea.hbm %s7, %s1914
          %s1917 = sshll.u32 %s1907, 4
          %s1918 = int_to_ptr.vmem [resolvable:$true] %s1917
          %1920 = dma.vmem_to_hbm [thread:$0]  %s1918, 128, %s1915, %s1904
        $region52: #{transformer_block.1} parent=47 // pred_fallthru
          _
      $region48: #{transformer_block.1} parent=5 // pred_fallthru
        _
      %p1921 = scmp.le.s32.totalorder 2, %s16
      // Predicated region
      $region53: #{transformer_block.1} parent=5 // pred_check
        %p1922 = pneg %p1921
      $region54: #{transformer_block.1} parent=5 // pred_check_branch
        %1924 = sbr.rel (%p1922) target = $region56
      $region55: #{transformer_block.1} parent=5 // pred_region
        %s1925 = ssub.s32 %s16, 2
        // Predicated region
        $region57: #{transformer_block.1} parent=55 // pred_check
          %p1926 = pneg %p197
        $region58: #{transformer_block.1} parent=55 // pred_check_branch
          %1928 = sbr.rel (%p1926) target = $region60
        $region59: #{transformer_block.1} parent=55 // pred_region
          %s1929 = sand.u32 %s182, 1
          %s1930 = scalar_lea.sflag [#allocation3], %s1929
          %s1931 = sand.u32 %s182, 1
          %s1932 = smul.addr %s1931, 8
          %s1933 = scalar_lea.vmem [#allocation2], %s1932
          %1934 = dma.done %s1930, 128
        $region60: #{transformer_block.1} parent=55 // pred_fallthru
          _
      $region56: #{transformer_block.1} parent=5 // pred_fallthru
        _
    $region6: #{transformer_block.1} parent=1 // loop_footer
      %s20 = sadd.s32 1, %s16
    $region7: #{transformer_block.1} parent=1 // loop_footer_branch
      %15 = sbr.rel target = $region3
    $region8: #{transformer_block.1} parent=1 // loop_exit
      _
    %1935 = vsyncpa [#allocation3], 1
    %s1936 = scalar_lea.sflag [#allocation3], 1
    %1937 = vsyncpa %s1936, 1

</llo_original>
